<compile_context>
chip_gen: v5e
topology: v5e:2x2
jax: 0.10.0
libtpu: 0.0.40
codegen_flags: <defaults>
</compile_context>

<pallas_src>
import jax
import jax.numpy as jnp
from jax.experimental import pallas as pl
from jax.experimental.pallas import tpu as pltpu


def _channel_layer_norm(x, gamma, beta, eps=1e-5):
    """LayerNorm over the channel axis (axis 0) of a channels-major (C, T) tile.

    Equivalent to nn.LayerNorm(dim) applied to the tokens-major (T, C) tensor:
    biased variance, eps=1e-5.  gamma/beta are (C, 1) columns broadcast over
    the lane/token axis."""
    mu = jnp.mean(x, axis=0, keepdims=True)
    var = jnp.mean((x - mu) ** 2, axis=0, keepdims=True)
    return (x - mu) * jax.lax.rsqrt(var + eps) * gamma + beta


def _erf(x):
    # Abramowitz & Stegun 7.1.26 rational approximation (|err| < 1.5e-7 vs the
    # exact erf used by PyTorch's nn.GELU).  Kernel-only: the divide is routed
    # to the EUP via pl.reciprocal so it stays off the VALU.
    a1, a2, a3, a4, a5 = (0.254829592, -0.284496736, 1.421413741,
                          -1.453152027, 1.061405429)
    p = 0.3275911
    ax = jnp.abs(x)
    t = pl.reciprocal(1.0 + p * ax, approx=True)
    poly = ((((a5 * t + a4) * t + a3) * t + a2) * t + a1) * t
    y = 1.0 - poly * jnp.exp(-ax * ax)
    return jnp.where(x < 0.0, -y, y)


def _gelu(x):
    # PyTorch nn.GELU() default is the exact erf form; reproduced via _erf.
    return 0.5 * x * (1.0 + _erf(x * 0.7071067811865476))


def token_decoder_kernel(
    x_ref,      # (bblk, C, N) query tokens, channels-major (tokens in lanes)
    pos_ref,    # (1, C, N)    positional embedding (shared across batch)
    m_ref,      # (bblk, C, L) memory tokens, channels-major
    wleft_ref,  # (3H+M, C)    row-stacked [Wq^T * scale ; Wk^T ; Wv^T ; W1^T]
    wo_t_ref,   # (C, H)       Wo^T
    w2_t_ref,   # (C, M)       W2^T
    bias_ref,   # (M, 7)       cols 0..5 (rows 0:C): ln1_g, ln1_b, ln2_g, ln2_b, bo, b2; col 6: b1
    o_ref,      # (bblk, C, N)
):
    bblk = x_ref.shape[0]
    c = wo_t_ref.shape[0]
    heads = wo_t_ref.shape[1]
    mlp = w2_t_ref.shape[1]
    mem_len = m_ref.shape[2]

    # Static, sublane-tile-aligned splits of the packed weight slab (free views).
    wq_t = wleft_ref[0:heads, :]                        # (H, C), scale pre-folded
    wkv_t = wleft_ref[heads:3 * heads, :]               # (2H, C)
    w1_t = wleft_ref[3 * heads:3 * heads + mlp, :]      # (M, C)

    bias = bias_ref[...]
    ln1_g, ln1_b = bias[0:c, 0:1], bias[0:c, 1:2]
    ln2_g, ln2_b = bias[0:c, 2:3], bias[0:c, 3:4]
    bo, b2 = bias[0:c, 4:5], bias[0:c, 5:6]
    b1 = bias[0:mlp, 6:7]

    pos = pos_ref[0]                                    # (C, N)

    for bi in range(bblk):   # unrolled over the batch elements in this block
        # Fused pos-embedding add; the NCHW->tokens rearrange is a free reshape
        # because the kernel keeps the channels-major transpose as its layout.
        x = x_ref[bi] + pos                             # (C, N)
        m_t = m_ref[bi]                                 # (C, L)

        # PreNorm2: the same LayerNorm applied to both query and memory tokens.
        xn = _channel_layer_norm(x, ln1_g, ln1_b)
        mn = _channel_layer_norm(m_t, ln1_g, ln1_b)

        # Projections (Linear, bias=False); K and V share one MXU matmul.
        qT = jnp.dot(wq_t, xn, preferred_element_type=jnp.float32)    # (H, N)
        kvT = jnp.dot(wkv_t, mn, preferred_element_type=jnp.float32)  # (2H, L)
        kT = kvT[0:heads, :]                            # (H, L)
        vT = kvT[heads:, :]                             # (H, L)

        # dim_head == 1 cross-attention, unrolled over the L memory tokens.
        # kT[:, l:l+1] / vT[:, l:l+1] are static lane slices lane-broadcast
        # against the lane-dense qT: pure VALU/EUP work, no lane<->sublane
        # relayouts and no XLU cross-sublane reductions.
        d_l = [kT[:, l:l + 1] * qT for l in range(mem_len)]           # L x (H, N)
        dmax = d_l[0]
        for l in range(1, mem_len):
            dmax = jnp.maximum(dmax, d_l[l])
        e = jnp.exp(d_l[0] - dmax)
        numer = e * vT[:, 0:1]
        denom = e
        for l in range(1, mem_len):
            e = jnp.exp(d_l[l] - dmax)
            numer = numer + e * vT[:, l:l + 1]
            denom = denom + e
        # Single post-scale normalization on the otherwise-idle EUP slot.
        attn_T = numer * pl.reciprocal(denom, approx=True)            # (H, N)

        # to_out: Linear(inner, dim) + bias (Dropout(0) == identity), residual.
        x = x + jnp.dot(wo_t_ref[...], attn_T,
                        preferred_element_type=jnp.float32) + bo

        # FeedForward: LN -> Linear(dim, mlp) -> GELU -> Linear(mlp, dim), residual.
        xn2 = _channel_layer_norm(x, ln2_g, ln2_b)
        h1 = jnp.dot(w1_t, xn2, preferred_element_type=jnp.float32) + b1   # (M, N)
        h1 = _gelu(h1)
        x = x + jnp.dot(w2_t_ref[...], h1,
                        preferred_element_type=jnp.float32) + b2

        o_ref[bi] = x   # (C, N): 256-wide last dim -> unmasked full-lane stores


def _single_tensorcore_device() -> bool:
    """Best effort: True on single-TensorCore chips (v5e/v6e/v2/v3) where
    merging the batch into one grid step saves per-step overhead; False on
    multi-TensorCore / megacore chips (v7x/v4/v5p) where a 'parallel' batch
    grid lets the cores split the work.  Unknown -> False (never wrong)."""
    try:
        kind = jax.devices()[0].device_kind.lower()
    except Exception:
        return False
    if any(tag in kind for tag in ("v7", "v5p", "v4")):
        return False
    if any(tag in kind for tag in ("lite", "v5e", "v6", "v2", "v3")):
        return True
    return False


def token_decoder_forward(x_nchw, m, params, *, heads=8):
    b, c, hh, ww = x_nchw.shape
    n = hh * ww
    mem_len = m.shape[1]
    inner = params["wq"].shape[1]
    mlp = params["w1"].shape[1]
    assert inner == heads, "Cross_Attention(dim_head=True) => inner_dim == heads"
    scale = float(c) ** -0.5   # Cross_Attention: self.scale = dim ** -0.5

    # NCHW == (B, C, H*W): free reshapes, no HBM transposes for x / pos / out.
    x_cn = x_nchw.reshape(b, c, n)
    pos_cn = params["pos"].reshape(1, c, n)
    m_t = jnp.transpose(m, (0, 2, 1))                     # (B, C, L), tiny

    # Packed, pre-transposed weights (trace-time XLA work on tiny arrays).
    # Row-stacked slab [Wq^T * scale ; Wk^T ; Wv^T ; W1^T] -> (3H + M, C);
    # the attention scale is folded into Wq here (free).
    wleft = jnp.concatenate(
        [params["wq"].T * scale, params["wk"].T, params["wv"].T, params["w1"].T],
        axis=0)
    wo_t = params["wo"].T                                 # (C, H)
    w2_t = params["w2"].T                                 # (C, M)

    # One (M, 7) slab for all seven small vectors (C-length ones zero-padded).
    rows = max(c, mlp)

    def _col(v):
        v = jnp.reshape(v, (-1,))
        return jnp.pad(v, (0, rows - v.shape[0]))[:, None]

    bias_slab = jnp.concatenate(
        [_col(params["ln1_g"]), _col(params["ln1_b"]),
         _col(params["ln2_g"]), _col(params["ln2_b"]),
         _col(params["bo"]), _col(params["b2"]), _col(params["b1"])], axis=1)

    # Chip-aware batch handling (see _single_tensorcore_device).
    bblk = b if _single_tensorcore_device() else 1
    nblocks = b // bblk

    def rep(shape):
        nd = len(shape)
        return pl.BlockSpec(shape, lambda i, _nd=nd: (0,) * _nd)

    out_cn = pl.pallas_call(
        token_decoder_kernel,
        out_shape=jax.ShapeDtypeStruct((b, c, n), jnp.float32),
        grid=(nblocks,),
        in_specs=[
            pl.BlockSpec((bblk, c, n), lambda i: (i, 0, 0)),      # x (channels-major)
            rep((1, c, n)),                                       # pos embedding
            pl.BlockSpec((bblk, c, mem_len), lambda i: (i, 0, 0)),  # memory
            rep(wleft.shape),                                     # [Wq*scale;Wk;Wv;W1]^T
            rep(wo_t.shape),                                      # Wo^T
            rep(w2_t.shape),                                      # W2^T
            rep(bias_slab.shape),                                 # packed LN/bias vectors
        ],
        out_specs=pl.BlockSpec((bblk, c, n), lambda i: (i, 0, 0)),
        compiler_params=pltpu.CompilerParams(dimension_semantics=("parallel",)),
    )(x_cn, pos_cn, m_t, wleft, wo_t, w2_t, bias_slab)

    return out_cn.reshape(b, c, hh, ww)   # free reshape back to NCHW


def token_decoder_reference(x_nchw, m, params, *, heads=8):
    """Pure-JAX tokens-major reference: exact erf GELU + HIGHEST-precision matmuls."""
    prec = jax.lax.Precision.HIGHEST
    b, c, hh, ww = x_nchw.shape
    scale = float(c) ** -0.5
    x = x_nchw + params["pos"]
    x = jnp.transpose(x, (0, 2, 3, 1)).reshape(b, hh * ww, c)

    def ln(t, g, bta):
        mu = jnp.mean(t, axis=-1, keepdims=True)
        var = jnp.mean((t - mu) ** 2, axis=-1, keepdims=True)
        return (t - mu) * jax.lax.rsqrt(var + 1e-5) * g + bta

    xn = ln(x, params["ln1_g"], params["ln1_b"])
    mn = ln(m, params["ln1_g"], params["ln1_b"])
    q = jnp.einsum("bnc,ci->bni", xn, params["wq"], precision=prec)
    k = jnp.einsum("blc,ci->bli", mn, params["wk"], precision=prec)
    v = jnp.einsum("blc,ci->bli", mn, params["wv"], precision=prec)
    d = q.shape[-1] // heads
    qh = q.reshape(b, -1, heads, d)
    kh = k.reshape(b, -1, heads, d)
    vh = v.reshape(b, -1, heads, d)
    dots = jnp.einsum("bnhd,blhd->bhnl", qh, kh, precision=prec) * scale
    attn = jax.nn.softmax(dots, axis=-1)
    out = jnp.einsum("bhnl,blhd->bnhd", attn, vh,
                     precision=prec).reshape(b, -1, heads * d)
    out = jnp.einsum("bni,ic->bnc", out, params["wo"], precision=prec) + params["bo"]
    x = x + out

    xn2 = ln(x, params["ln2_g"], params["ln2_b"])
    h1 = jnp.einsum("bnc,cm->bnm", xn2, params["w1"], precision=prec) + params["b1"]
    h1 = 0.5 * h1 * (1.0 + jax.lax.erf(h1 * 0.7071067811865476))   # exact-erf GELU
    x = x + jnp.einsum("bnm,mc->bnc", h1, params["w2"], precision=prec) + params["b2"]
    return jnp.transpose(x.reshape(b, hh, ww, c), (0, 3, 1, 2))


def init_params(key, in_chan, size, heads, dim_head=1):
    inner = heads * dim_head          # dim_head=True -> 1 per head
    mlp = in_chan * 2
    ks = jax.random.split(key, 10)
    rn = lambda k, shape, s: jax.random.normal(k, shape, jnp.float32) * s
    return dict(
        pos=jax.random.normal(ks[0], (1, in_chan, size, size), jnp.float32),
        ln1_g=jnp.ones((1, in_chan), jnp.float32),
        ln1_b=jnp.zeros((1, in_chan), jnp.float32),
        wq=rn(ks[1], (in_chan, inner), 0.1),
        wk=rn(ks[2], (in_chan, inner), 0.1),
        wv=rn(ks[3], (in_chan, inner), 0.1),
        wo=rn(ks[4], (inner, in_chan), 0.1),
        bo=rn(ks[5], (1, in_chan), 0.02),
        ln2_g=jnp.ones((1, in_chan), jnp.float32),
        ln2_b=jnp.zeros((1, in_chan), jnp.float32),
        w1=rn(ks[6], (in_chan, mlp), 0.1),
        b1=rn(ks[7], (1, mlp), 0.02),
        w2=rn(ks[8], (mlp, in_chan), 0.1),
        b2=rn(ks[9], (1, in_chan), 0.02),
    )


if __name__ == "__main__":
    B, C, SIZE, HEADS, L = 2, 32, 16, 8, 8  # in_chan=32, spatial 16x16, 8 memory tokens

    key = jax.random.PRNGKey(0)
    k_params, k_x, k_m = jax.random.split(key, 3)
    params = init_params(k_params, in_chan=C, size=SIZE, heads=HEADS)

    x = jax.random.normal(k_x, (B, C, SIZE, SIZE), jnp.float32)
    m = jax.random.normal(k_m, (B, L, C), jnp.float32)

    out = jax.block_until_ready(token_decoder_forward(x, m, params, heads=HEADS))
    ref = jax.block_until_ready(token_decoder_reference(x, m, params, heads=HEADS))

    assert out.shape == (B, C, SIZE, SIZE), out.shape
    # 2e-3 tolerance covers the two approximate (EUP) reciprocals used inside the
    # kernel (softmax normalization and the erf divide, each ~2^-12 relative);
    # everything else is exact f32 and the reference uses exact lax.erf GELU.
    err = float(jnp.max(jnp.abs(out - ref)))
    assert jnp.allclose(out, ref, atol=2e-3, rtol=2e-3), err
    print("KERNEL_OK")
</pallas_src>

<mosaic_0001>
module attributes {stable_mosaic.version = 11 : i64} {
  func.func @token_decoder_kernel(%arg0: i32, %arg1: memref<1x32x256xf32, #tpu.memory_space<vmem>>, %arg2: memref<1x32x256xf32, #tpu.memory_space<vmem>>, %arg3: memref<1x32x8xf32, #tpu.memory_space<vmem>>, %arg4: memref<88x32xf32, #tpu.memory_space<vmem>>, %arg5: memref<32x8xf32, #tpu.memory_space<vmem>>, %arg6: memref<32x64xf32, #tpu.memory_space<vmem>>, %arg7: memref<64x7xf32, #tpu.memory_space<vmem>>, %arg8: memref<1x32x256xf32, #tpu.memory_space<vmem>>) attributes {dimension_semantics = [#tpu.dimension_semantics<parallel>], iteration_bounds = array<i64: 2>, scalar_prefetch = 0 : i64, scratch_operands = 0 : i64, tpu.core_type = #tpu.core_type<tc>, window_params = [{transform_indices = @transform_0, window_bounds = array<i64: 1, 32, 256>}, {pipeline_mode = #tpu.pipeline_mode<synchronous>, transform_indices = @transform_1, window_bounds = array<i64: 1, 32, 256>}, {transform_indices = @transform_2, window_bounds = array<i64: 1, 32, 8>}, {pipeline_mode = #tpu.pipeline_mode<synchronous>, transform_indices = @transform_3, window_bounds = array<i64: 88, 32>}, {pipeline_mode = #tpu.pipeline_mode<synchronous>, transform_indices = @transform_4, window_bounds = array<i64: 32, 8>}, {pipeline_mode = #tpu.pipeline_mode<synchronous>, transform_indices = @transform_5, window_bounds = array<i64: 32, 64>}, {pipeline_mode = #tpu.pipeline_mode<synchronous>, transform_indices = @transform_6, window_bounds = array<i64: 64, 7>}, {transform_indices = @transform_7, window_bounds = array<i64: 1, 32, 256>}]} {
    %c0 = arith.constant 0 : index
    %c0_0 = arith.constant 0 : index
    %0 = vector.load %arg4[%c0, %c0_0] : memref<88x32xf32, #tpu.memory_space<vmem>>, vector<8x32xf32>
    %c8 = arith.constant 8 : index
    %c0_1 = arith.constant 0 : index
    %1 = vector.load %arg4[%c8, %c0_1] : memref<88x32xf32, #tpu.memory_space<vmem>>, vector<16x32xf32>
    %c24 = arith.constant 24 : index
    %c0_2 = arith.constant 0 : index
    %2 = vector.load %arg4[%c24, %c0_2] : memref<88x32xf32, #tpu.memory_space<vmem>>, vector<64x32xf32>
    %c0_3 = arith.constant 0 : index
    %c0_4 = arith.constant 0 : index
    %3 = vector.load %arg7[%c0_3, %c0_4] : memref<64x7xf32, #tpu.memory_space<vmem>>, vector<64x7xf32>
    %4 = vector.extract_strided_slice %3 {offsets = [0, 0], sizes = [32, 1], strides = [1, 1]} : vector<64x7xf32> to vector<32x1xf32>
    %5 = vector.extract_strided_slice %3 {offsets = [0, 1], sizes = [32, 1], strides = [1, 1]} : vector<64x7xf32> to vector<32x1xf32>
    %6 = vector.extract_strided_slice %3 {offsets = [0, 2], sizes = [32, 1], strides = [1, 1]} : vector<64x7xf32> to vector<32x1xf32>
    %7 = vector.extract_strided_slice %3 {offsets = [0, 3], sizes = [32, 1], strides = [1, 1]} : vector<64x7xf32> to vector<32x1xf32>
    %8 = vector.extract_strided_slice %3 {offsets = [0, 4], sizes = [32, 1], strides = [1, 1]} : vector<64x7xf32> to vector<32x1xf32>
    %9 = vector.extract_strided_slice %3 {offsets = [0, 5], sizes = [32, 1], strides = [1, 1]} : vector<64x7xf32> to vector<32x1xf32>
    %10 = vector.extract_strided_slice %3 {offsets = [0, 6], sizes = [64, 1], strides = [1, 1]} : vector<64x7xf32> to vector<64x1xf32>
    %c0_5 = arith.constant 0 : index
    %c0_6 = arith.constant 0 : index
    %c0_7 = arith.constant 0 : index
    %11 = vector.load %arg2[%c0_5, %c0_6, %c0_7] : memref<1x32x256xf32, #tpu.memory_space<vmem>>, vector<1x32x256xf32>
    %12 = vector.shape_cast %11 : vector<1x32x256xf32> to vector<32x256xf32>
    %c0_8 = arith.constant 0 : index
    %c0_9 = arith.constant 0 : index
    %c0_10 = arith.constant 0 : index
    %13 = vector.load %arg1[%c0_8, %c0_9, %c0_10] : memref<1x32x256xf32, #tpu.memory_space<vmem>>, vector<1x32x256xf32>
    %14 = vector.shape_cast %13 : vector<1x32x256xf32> to vector<32x256xf32>
    %15 = arith.addf %14, %12 : vector<32x256xf32>
    %c0_11 = arith.constant 0 : index
    %c0_12 = arith.constant 0 : index
    %c0_13 = arith.constant 0 : index
    %16 = vector.load %arg3[%c0_11, %c0_12, %c0_13] : memref<1x32x8xf32, #tpu.memory_space<vmem>>, vector<1x32x8xf32>
    %17 = vector.shape_cast %16 : vector<1x32x8xf32> to vector<32x8xf32>
    %cst = arith.constant dense<0.000000e+00> : vector<256xf32>
    %18 = vector.multi_reduction <add>, %15, %cst [0] : vector<32x256xf32> to vector<256xf32>
    %19 = vector.shape_cast %18 : vector<256xf32> to vector<1x256xf32>
    %cst_14 = arith.constant 3.200000e+01 : f32
    %20 = vector.broadcast %cst_14 : f32 to vector<1x256xf32>
    %21 = arith.divf %19, %20 : vector<1x256xf32>
    %22 = vector.broadcast %21 : vector<1x256xf32> to vector<32x256xf32>
    %23 = arith.subf %15, %22 : vector<32x256xf32>
    %24 = arith.mulf %23, %23 : vector<32x256xf32>
    %cst_15 = arith.constant dense<0.000000e+00> : vector<256xf32>
    %25 = vector.multi_reduction <add>, %24, %cst_15 [0] : vector<32x256xf32> to vector<256xf32>
    %26 = vector.shape_cast %25 : vector<256xf32> to vector<1x256xf32>
    %cst_16 = arith.constant 3.200000e+01 : f32
    %27 = vector.broadcast %cst_16 : f32 to vector<1x256xf32>
    %28 = arith.divf %26, %27 : vector<1x256xf32>
    %29 = vector.broadcast %21 : vector<1x256xf32> to vector<32x256xf32>
    %30 = arith.subf %15, %29 : vector<32x256xf32>
    %cst_17 = arith.constant 9.99999974E-6 : f32
    %31 = vector.broadcast %cst_17 : f32 to vector<1x256xf32>
    %32 = arith.addf %28, %31 : vector<1x256xf32>
    %33 = math.rsqrt %32 : vector<1x256xf32>
    %34 = vector.broadcast %33 : vector<1x256xf32> to vector<32x256xf32>
    %35 = arith.mulf %30, %34 : vector<32x256xf32>
    %36 = vector.broadcast %4 : vector<32x1xf32> to vector<32x256xf32>
    %37 = arith.mulf %35, %36 : vector<32x256xf32>
    %38 = vector.broadcast %5 : vector<32x1xf32> to vector<32x256xf32>
    %39 = arith.addf %37, %38 : vector<32x256xf32>
    %cst_18 = arith.constant dense<0.000000e+00> : vector<8xf32>
    %40 = vector.multi_reduction <add>, %17, %cst_18 [0] : vector<32x8xf32> to vector<8xf32>
    %41 = vector.shape_cast %40 : vector<8xf32> to vector<1x8xf32>
    %cst_19 = arith.constant 3.200000e+01 : f32
    %42 = vector.broadcast %cst_19 : f32 to vector<1x8xf32>
    %43 = arith.divf %41, %42 : vector<1x8xf32>
    %44 = vector.broadcast %43 : vector<1x8xf32> to vector<32x8xf32>
    %45 = arith.subf %17, %44 : vector<32x8xf32>
    %46 = arith.mulf %45, %45 : vector<32x8xf32>
    %cst_20 = arith.constant dense<0.000000e+00> : vector<8xf32>
    %47 = vector.multi_reduction <add>, %46, %cst_20 [0] : vector<32x8xf32> to vector<8xf32>
    %48 = vector.shape_cast %47 : vector<8xf32> to vector<1x8xf32>
    %cst_21 = arith.constant 3.200000e+01 : f32
    %49 = vector.broadcast %cst_21 : f32 to vector<1x8xf32>
    %50 = arith.divf %48, %49 : vector<1x8xf32>
    %51 = vector.broadcast %43 : vector<1x8xf32> to vector<32x8xf32>
    %52 = arith.subf %17, %51 : vector<32x8xf32>
    %cst_22 = arith.constant 9.99999974E-6 : f32
    %53 = vector.broadcast %cst_22 : f32 to vector<1x8xf32>
    %54 = arith.addf %50, %53 : vector<1x8xf32>
    %55 = math.rsqrt %54 : vector<1x8xf32>
    %56 = vector.broadcast %55 : vector<1x8xf32> to vector<32x8xf32>
    %57 = arith.mulf %52, %56 : vector<32x8xf32>
    %58 = vector.broadcast %4 : vector<32x1xf32> to vector<32x8xf32>
    %59 = arith.mulf %57, %58 : vector<32x8xf32>
    %60 = vector.broadcast %5 : vector<32x1xf32> to vector<32x8xf32>
    %61 = arith.addf %59, %60 : vector<32x8xf32>
    %cst_23 = arith.constant dense<0.000000e+00> : vector<8x256xf32>
    %62 = tpu.matmul %0, %39, %cst_23 {dimension_numbers = #tpu.dot_dimension_numbers<[1], [0], [0], [1], [0, 0, 1, 1], [], []>} : vector<8x32xf32>, vector<32x256xf32>, vector<8x256xf32> -> vector<8x256xf32>
    %cst_24 = arith.constant dense<0.000000e+00> : vector<16x8xf32>
    %63 = tpu.matmul %1, %61, %cst_24 {dimension_numbers = #tpu.dot_dimension_numbers<[1], [0], [0], [1], [0, 0, 1, 1], [], []>} : vector<16x32xf32>, vector<32x8xf32>, vector<16x8xf32> -> vector<16x8xf32>
    %64 = vector.extract_strided_slice %63 {offsets = [0, 0], sizes = [8, 8], strides = [1, 1]} : vector<16x8xf32> to vector<8x8xf32>
    %65 = vector.extract_strided_slice %63 {offsets = [8, 0], sizes = [8, 8], strides = [1, 1]} : vector<16x8xf32> to vector<8x8xf32>
    %66 = vector.extract_strided_slice %64 {offsets = [0, 0], sizes = [8, 1], strides = [1, 1]} : vector<8x8xf32> to vector<8x1xf32>
    %67 = vector.broadcast %66 : vector<8x1xf32> to vector<8x256xf32>
    %68 = arith.mulf %67, %62 : vector<8x256xf32>
    %69 = vector.extract_strided_slice %64 {offsets = [0, 1], sizes = [8, 1], strides = [1, 1]} : vector<8x8xf32> to vector<8x1xf32>
    %70 = vector.broadcast %69 : vector<8x1xf32> to vector<8x256xf32>
    %71 = arith.mulf %70, %62 : vector<8x256xf32>
    %72 = vector.extract_strided_slice %64 {offsets = [0, 2], sizes = [8, 1], strides = [1, 1]} : vector<8x8xf32> to vector<8x1xf32>
    %73 = vector.broadcast %72 : vector<8x1xf32> to vector<8x256xf32>
    %74 = arith.mulf %73, %62 : vector<8x256xf32>
    %75 = vector.extract_strided_slice %64 {offsets = [0, 3], sizes = [8, 1], strides = [1, 1]} : vector<8x8xf32> to vector<8x1xf32>
    %76 = vector.broadcast %75 : vector<8x1xf32> to vector<8x256xf32>
    %77 = arith.mulf %76, %62 : vector<8x256xf32>
    %78 = vector.extract_strided_slice %64 {offsets = [0, 4], sizes = [8, 1], strides = [1, 1]} : vector<8x8xf32> to vector<8x1xf32>
    %79 = vector.broadcast %78 : vector<8x1xf32> to vector<8x256xf32>
    %80 = arith.mulf %79, %62 : vector<8x256xf32>
    %81 = vector.extract_strided_slice %64 {offsets = [0, 5], sizes = [8, 1], strides = [1, 1]} : vector<8x8xf32> to vector<8x1xf32>
    %82 = vector.broadcast %81 : vector<8x1xf32> to vector<8x256xf32>
    %83 = arith.mulf %82, %62 : vector<8x256xf32>
    %84 = vector.extract_strided_slice %64 {offsets = [0, 6], sizes = [8, 1], strides = [1, 1]} : vector<8x8xf32> to vector<8x1xf32>
    %85 = vector.broadcast %84 : vector<8x1xf32> to vector<8x256xf32>
    %86 = arith.mulf %85, %62 : vector<8x256xf32>
    %87 = vector.extract_strided_slice %64 {offsets = [0, 7], sizes = [8, 1], strides = [1, 1]} : vector<8x8xf32> to vector<8x1xf32>
    %88 = vector.broadcast %87 : vector<8x1xf32> to vector<8x256xf32>
    %89 = arith.mulf %88, %62 : vector<8x256xf32>
    %90 = arith.maximumf %68, %71 : vector<8x256xf32>
    %91 = arith.maximumf %90, %74 : vector<8x256xf32>
    %92 = arith.maximumf %91, %77 : vector<8x256xf32>
    %93 = arith.maximumf %92, %80 : vector<8x256xf32>
    %94 = arith.maximumf %93, %83 : vector<8x256xf32>
    %95 = arith.maximumf %94, %86 : vector<8x256xf32>
    %96 = arith.maximumf %95, %89 : vector<8x256xf32>
    %97 = arith.subf %68, %96 : vector<8x256xf32>
    %98 = math.exp %97 : vector<8x256xf32>
    %99 = vector.extract_strided_slice %65 {offsets = [0, 0], sizes = [8, 1], strides = [1, 1]} : vector<8x8xf32> to vector<8x1xf32>
    %100 = vector.broadcast %99 : vector<8x1xf32> to vector<8x256xf32>
    %101 = arith.mulf %98, %100 : vector<8x256xf32>
    %102 = arith.subf %71, %96 : vector<8x256xf32>
    %103 = math.exp %102 : vector<8x256xf32>
    %104 = vector.extract_strided_slice %65 {offsets = [0, 1], sizes = [8, 1], strides = [1, 1]} : vector<8x8xf32> to vector<8x1xf32>
    %105 = vector.broadcast %104 : vector<8x1xf32> to vector<8x256xf32>
    %106 = arith.mulf %103, %105 : vector<8x256xf32>
    %107 = arith.addf %101, %106 : vector<8x256xf32>
    %108 = arith.addf %98, %103 : vector<8x256xf32>
    %109 = arith.subf %74, %96 : vector<8x256xf32>
    %110 = math.exp %109 : vector<8x256xf32>
    %111 = vector.extract_strided_slice %65 {offsets = [0, 2], sizes = [8, 1], strides = [1, 1]} : vector<8x8xf32> to vector<8x1xf32>
    %112 = vector.broadcast %111 : vector<8x1xf32> to vector<8x256xf32>
    %113 = arith.mulf %110, %112 : vector<8x256xf32>
    %114 = arith.addf %107, %113 : vector<8x256xf32>
    %115 = arith.addf %108, %110 : vector<8x256xf32>
    %116 = arith.subf %77, %96 : vector<8x256xf32>
    %117 = math.exp %116 : vector<8x256xf32>
    %118 = vector.extract_strided_slice %65 {offsets = [0, 3], sizes = [8, 1], strides = [1, 1]} : vector<8x8xf32> to vector<8x1xf32>
    %119 = vector.broadcast %118 : vector<8x1xf32> to vector<8x256xf32>
    %120 = arith.mulf %117, %119 : vector<8x256xf32>
    %121 = arith.addf %114, %120 : vector<8x256xf32>
    %122 = arith.addf %115, %117 : vector<8x256xf32>
    %123 = arith.subf %80, %96 : vector<8x256xf32>
    %124 = math.exp %123 : vector<8x256xf32>
    %125 = vector.extract_strided_slice %65 {offsets = [0, 4], sizes = [8, 1], strides = [1, 1]} : vector<8x8xf32> to vector<8x1xf32>
    %126 = vector.broadcast %125 : vector<8x1xf32> to vector<8x256xf32>
    %127 = arith.mulf %124, %126 : vector<8x256xf32>
    %128 = arith.addf %121, %127 : vector<8x256xf32>
    %129 = arith.addf %122, %124 : vector<8x256xf32>
    %130 = arith.subf %83, %96 : vector<8x256xf32>
    %131 = math.exp %130 : vector<8x256xf32>
    %132 = vector.extract_strided_slice %65 {offsets = [0, 5], sizes = [8, 1], strides = [1, 1]} : vector<8x8xf32> to vector<8x1xf32>
    %133 = vector.broadcast %132 : vector<8x1xf32> to vector<8x256xf32>
    %134 = arith.mulf %131, %133 : vector<8x256xf32>
    %135 = arith.addf %128, %134 : vector<8x256xf32>
    %136 = arith.addf %129, %131 : vector<8x256xf32>
    %137 = arith.subf %86, %96 : vector<8x256xf32>
    %138 = math.exp %137 : vector<8x256xf32>
    %139 = vector.extract_strided_slice %65 {offsets = [0, 6], sizes = [8, 1], strides = [1, 1]} : vector<8x8xf32> to vector<8x1xf32>
    %140 = vector.broadcast %139 : vector<8x1xf32> to vector<8x256xf32>
    %141 = arith.mulf %138, %140 : vector<8x256xf32>
    %142 = arith.addf %135, %141 : vector<8x256xf32>
    %143 = arith.addf %136, %138 : vector<8x256xf32>
    %144 = arith.subf %89, %96 : vector<8x256xf32>
    %145 = math.exp %144 : vector<8x256xf32>
    %146 = vector.extract_strided_slice %65 {offsets = [0, 7], sizes = [8, 1], strides = [1, 1]} : vector<8x8xf32> to vector<8x1xf32>
    %147 = vector.broadcast %146 : vector<8x1xf32> to vector<8x256xf32>
    %148 = arith.mulf %145, %147 : vector<8x256xf32>
    %149 = arith.addf %142, %148 : vector<8x256xf32>
    %150 = arith.addf %143, %145 : vector<8x256xf32>
    %151 = tpu.reciprocal %150 {approx = true} : vector<8x256xf32> -> vector<8x256xf32>
    %152 = arith.mulf %149, %151 : vector<8x256xf32>
    %c0_25 = arith.constant 0 : index
    %c0_26 = arith.constant 0 : index
    %153 = vector.load %arg5[%c0_25, %c0_26] : memref<32x8xf32, #tpu.memory_space<vmem>>, vector<32x8xf32>
    %cst_27 = arith.constant dense<0.000000e+00> : vector<32x256xf32>
    %154 = tpu.matmul %153, %152, %cst_27 {dimension_numbers = #tpu.dot_dimension_numbers<[1], [0], [0], [1], [0, 0, 1, 1], [], []>} : vector<32x8xf32>, vector<8x256xf32>, vector<32x256xf32> -> vector<32x256xf32>
    %155 = arith.addf %15, %154 : vector<32x256xf32>
    %156 = vector.broadcast %8 : vector<32x1xf32> to vector<32x256xf32>
    %157 = arith.addf %155, %156 : vector<32x256xf32>
    %cst_28 = arith.constant dense<0.000000e+00> : vector<256xf32>
    %158 = vector.multi_reduction <add>, %157, %cst_28 [0] : vector<32x256xf32> to vector<256xf32>
    %159 = vector.shape_cast %158 : vector<256xf32> to vector<1x256xf32>
    %cst_29 = arith.constant 3.200000e+01 : f32
    %160 = vector.broadcast %cst_29 : f32 to vector<1x256xf32>
    %161 = arith.divf %159, %160 : vector<1x256xf32>
    %162 = vector.broadcast %161 : vector<1x256xf32> to vector<32x256xf32>
    %163 = arith.subf %157, %162 : vector<32x256xf32>
    %164 = arith.mulf %163, %163 : vector<32x256xf32>
    %cst_30 = arith.constant dense<0.000000e+00> : vector<256xf32>
    %165 = vector.multi_reduction <add>, %164, %cst_30 [0] : vector<32x256xf32> to vector<256xf32>
    %166 = vector.shape_cast %165 : vector<256xf32> to vector<1x256xf32>
    %cst_31 = arith.constant 3.200000e+01 : f32
    %167 = vector.broadcast %cst_31 : f32 to vector<1x256xf32>
    %168 = arith.divf %166, %167 : vector<1x256xf32>
    %169 = vector.broadcast %161 : vector<1x256xf32> to vector<32x256xf32>
    %170 = arith.subf %157, %169 : vector<32x256xf32>
    %cst_32 = arith.constant 9.99999974E-6 : f32
    %171 = vector.broadcast %cst_32 : f32 to vector<1x256xf32>
    %172 = arith.addf %168, %171 : vector<1x256xf32>
    %173 = math.rsqrt %172 : vector<1x256xf32>
    %174 = vector.broadcast %173 : vector<1x256xf32> to vector<32x256xf32>
    %175 = arith.mulf %170, %174 : vector<32x256xf32>
    %176 = vector.broadcast %6 : vector<32x1xf32> to vector<32x256xf32>
    %177 = arith.mulf %175, %176 : vector<32x256xf32>
    %178 = vector.broadcast %7 : vector<32x1xf32> to vector<32x256xf32>
    %179 = arith.addf %177, %178 : vector<32x256xf32>
    %cst_33 = arith.constant dense<0.000000e+00> : vector<64x256xf32>
    %180 = tpu.matmul %2, %179, %cst_33 {dimension_numbers = #tpu.dot_dimension_numbers<[1], [0], [0], [1], [0, 0, 1, 1], [], []>} : vector<64x32xf32>, vector<32x256xf32>, vector<64x256xf32> -> vector<64x256xf32>
    %181 = vector.broadcast %10 : vector<64x1xf32> to vector<64x256xf32>
    %182 = arith.addf %180, %181 : vector<64x256xf32>
    %cst_34 = arith.constant 5.000000e-01 : f32
    %183 = vector.broadcast %cst_34 : f32 to vector<64x256xf32>
    %184 = arith.mulf %183, %182 : vector<64x256xf32>
    %cst_35 = arith.constant 0.707106769 : f32
    %185 = vector.broadcast %cst_35 : f32 to vector<64x256xf32>
    %186 = arith.mulf %182, %185 : vector<64x256xf32>
    %187 = math.absf %186 : vector<64x256xf32>
    %cst_36 = arith.constant 0.327591091 : f32
    %188 = vector.broadcast %cst_36 : f32 to vector<64x256xf32>
    %189 = arith.mulf %188, %187 : vector<64x256xf32>
    %cst_37 = arith.constant 1.000000e+00 : f32
    %190 = vector.broadcast %cst_37 : f32 to vector<64x256xf32>
    %191 = arith.addf %190, %189 : vector<64x256xf32>
    %192 = tpu.reciprocal %191 {approx = true} : vector<64x256xf32> -> vector<64x256xf32>
    %cst_38 = arith.constant 1.06140542 : f32
    %193 = vector.broadcast %cst_38 : f32 to vector<64x256xf32>
    %194 = arith.mulf %193, %192 : vector<64x256xf32>
    %cst_39 = arith.constant -1.45315206 : f32
    %195 = vector.broadcast %cst_39 : f32 to vector<64x256xf32>
    %196 = arith.addf %194, %195 : vector<64x256xf32>
    %197 = arith.mulf %196, %192 : vector<64x256xf32>
    %cst_40 = arith.constant 1.42141378 : f32
    %198 = vector.broadcast %cst_40 : f32 to vector<64x256xf32>
    %199 = arith.addf %197, %198 : vector<64x256xf32>
    %200 = arith.mulf %199, %192 : vector<64x256xf32>
    %cst_41 = arith.constant -0.284496725 : f32
    %201 = vector.broadcast %cst_41 : f32 to vector<64x256xf32>
    %202 = arith.addf %200, %201 : vector<64x256xf32>
    %203 = arith.mulf %202, %192 : vector<64x256xf32>
    %cst_42 = arith.constant 0.254829586 : f32
    %204 = vector.broadcast %cst_42 : f32 to vector<64x256xf32>
    %205 = arith.addf %203, %204 : vector<64x256xf32>
    %206 = arith.mulf %205, %192 : vector<64x256xf32>
    %cst_43 = arith.constant 0.000000e+00 : f32
    %207 = vector.broadcast %cst_43 : f32 to vector<64x256xf32>
    %208 = arith.subf %207, %187 : vector<64x256xf32>
    %209 = arith.mulf %208, %187 : vector<64x256xf32>
    %210 = math.exp %209 : vector<64x256xf32>
    %211 = arith.mulf %206, %210 : vector<64x256xf32>
    %cst_44 = arith.constant 1.000000e+00 : f32
    %212 = vector.broadcast %cst_44 : f32 to vector<64x256xf32>
    %213 = arith.subf %212, %211 : vector<64x256xf32>
    %cst_45 = arith.constant 0.000000e+00 : f32
    %214 = vector.broadcast %cst_45 : f32 to vector<64x256xf32>
    %215 = arith.cmpf olt, %186, %214 : vector<64x256xf32>
    %cst_46 = arith.constant 0.000000e+00 : f32
    %216 = vector.broadcast %cst_46 : f32 to vector<64x256xf32>
    %217 = arith.subf %216, %213 : vector<64x256xf32>
    %218 = arith.select %215, %217, %213 : vector<64x256xi1>, vector<64x256xf32>
    %cst_47 = arith.constant 1.000000e+00 : f32
    %219 = vector.broadcast %cst_47 : f32 to vector<64x256xf32>
    %220 = arith.addf %219, %218 : vector<64x256xf32>
    %221 = arith.mulf %184, %220 : vector<64x256xf32>
    %c0_48 = arith.constant 0 : index
    %c0_49 = arith.constant 0 : index
    %222 = vector.load %arg6[%c0_48, %c0_49] : memref<32x64xf32, #tpu.memory_space<vmem>>, vector<32x64xf32>
    %cst_50 = arith.constant dense<0.000000e+00> : vector<32x256xf32>
    %223 = tpu.matmul %222, %221, %cst_50 {dimension_numbers = #tpu.dot_dimension_numbers<[1], [0], [0], [1], [0, 0, 1, 1], [], []>} : vector<32x64xf32>, vector<64x256xf32>, vector<32x256xf32> -> vector<32x256xf32>
    %224 = arith.addf %157, %223 : vector<32x256xf32>
    %225 = vector.broadcast %9 : vector<32x1xf32> to vector<32x256xf32>
    %226 = arith.addf %224, %225 : vector<32x256xf32>
    %c0_51 = arith.constant 0 : index
    %c0_52 = arith.constant 0 : index
    %c0_53 = arith.constant 0 : index
    %227 = vector.load %arg8[%c0_51, %c0_52, %c0_53] : memref<1x32x256xf32, #tpu.memory_space<vmem>>, vector<1x32x256xf32>
    %228 = vector.shape_cast %227 : vector<1x32x256xf32> to vector<32x256xf32>
    %229 = vector.shape_cast %226 : vector<32x256xf32> to vector<1x32x256xf32>
    tpu.vector_store %arg8[%c0_51, %c0_52, %c0_53], %229 {strides = array<i32>} : memref<1x32x256xf32, #tpu.memory_space<vmem>>, vector<1x32x256xf32>,
    return
  }
  func.func @transform_0(%arg0: i32) -> (i32, i32, i32) {
    %c0_i32 = arith.constant 0 : i32
    %c0_i32_0 = arith.constant 0 : i32
    %c0_i32_1 = arith.constant 0 : i32
    return %arg0, %c0_i32, %c0_i32_0 : i32, i32, i32
  }
  func.func @transform_1(%arg0: i32) -> (i32, i32, i32) {
    %c0_i32 = arith.constant 0 : i32
    %c0_i32_0 = arith.constant 0 : i32
    %c0_i32_1 = arith.constant 0 : i32
    %c0_i32_2 = arith.constant 0 : i32
    return %c0_i32, %c0_i32_0, %c0_i32_1 : i32, i32, i32
  }
  func.func @transform_2(%arg0: i32) -> (i32, i32, i32) {
    %c0_i32 = arith.constant 0 : i32
    %c0_i32_0 = arith.constant 0 : i32
    %c0_i32_1 = arith.constant 0 : i32
    return %arg0, %c0_i32, %c0_i32_0 : i32, i32, i32
  }
  func.func @transform_3(%arg0: i32) -> (i32, i32) {
    %c0_i32 = arith.constant 0 : i32
    %c0_i32_0 = arith.constant 0 : i32
    %c0_i32_1 = arith.constant 0 : i32
    return %c0_i32, %c0_i32_0 : i32, i32
  }
  func.func @transform_4(%arg0: i32) -> (i32, i32) {
    %c0_i32 = arith.constant 0 : i32
    %c0_i32_0 = arith.constant 0 : i32
    %c0_i32_1 = arith.constant 0 : i32
    return %c0_i32, %c0_i32_0 : i32, i32
  }
  func.func @transform_5(%arg0: i32) -> (i32, i32) {
    %c0_i32 = arith.constant 0 : i32
    %c0_i32_0 = arith.constant 0 : i32
    %c0_i32_1 = arith.constant 0 : i32
    return %c0_i32, %c0_i32_0 : i32, i32
  }
  func.func @transform_6(%arg0: i32) -> (i32, i32) {
    %c0_i32 = arith.constant 0 : i32
    %c0_i32_0 = arith.constant 0 : i32
    %c0_i32_1 = arith.constant 0 : i32
    return %c0_i32, %c0_i32_0 : i32, i32
  }
  func.func @transform_7(%arg0: i32) -> (i32, i32, i32) {
    %c0_i32 = arith.constant 0 : i32
    %c0_i32_0 = arith.constant 0 : i32
    %c0_i32_1 = arith.constant 0 : i32
    return %arg0, %c0_i32, %c0_i32_0 : i32, i32, i32
  }
}

</mosaic_0001>

<llo_original>
// kernel: tpu_custom_call.1
$region0: #{tpu_custom_call.1}
  #allocation0 [shape = 'u32[]', space=smem, size = 0x4, offset = 0x4, fixed_abs, tag = 'smem constant byte address 0x4 - core index']
  #allocation1 [shape = 'u32[72,128]{1,0:T(1,128)}', space=vmem, size = 0x9000, scoped, tag = 'internal scratch']
  %s0 = inlined_call_operand.vmem [shape: f32[2,32,256], index: 0, kind: input, shape index: {}]
  %s1 = inlined_call_operand.vmem [shape: f32[1,32,256], index: 1, kind: input, shape index: {}]
  %s2 = inlined_call_operand.vmem [shape: f32[2,32,8], index: 2, kind: input, shape index: {}]
  %s3 = inlined_call_operand.vmem [shape: f32[88,32], index: 3, kind: input, shape index: {}]
  %s4 = inlined_call_operand.vmem [shape: f32[32,8], index: 4, kind: input, shape index: {}]
  %s5 = inlined_call_operand.vmem [shape: f32[32,64], index: 5, kind: input, shape index: {}]
  %s6 = inlined_call_operand.vmem [shape: f32[64,7], index: 6, kind: input, shape index: {}]
  %s7 = inlined_call_operand.hbm [shape: f32[2,32,256], index: 7, kind: output, shape index: {}]
  %s8 = sld [smem:[#allocation0]]
  $region61: #{tpu_custom_call.1} parent=0
    _
  %s10 = ssub.s32 1, %s8
  %s11 = scalar_select 0, %s10, %s8
  $region1: #{tpu_custom_call.1} parent=0
    #allocation2 [shape = 'u8[65536]{0}', space=vmem, size = 0x10000, scoped, tag = 'output window, operand 0']
    #allocation3 [shape = 's32[2]{0}', space=sflag, size = 0x8, scoped, tag = 'scoped memory for tpu_custom_call.1']
    %12 = vsyncpa [#allocation3], 0
    %s13 = scalar_lea.sflag [#allocation3], 1
    %14 = vsyncpa %s13, 0
    loop: start=0, step=1, limit=4
    $region2: #{tpu_custom_call.1} parent=1 // loop_pre_header
      _
    $region3: #{tpu_custom_call.1} parent=1 // loop_header
      %s16 = sphi 0, %s20
      %p17 = scmp.ge.s32.totalorder %s16, 4
      %s26 = sphi 0, %s28
      %s29 = sphi 0, %s26
      %s30 = sphi 0, %s29
      %s46 = sphi 0, %s30
      %s50 = sphi 0, %s50
      %s52 = sphi 0, %s50
      %s53 = sphi 0, %s52
      %s67 = sphi 0, %s53
      %s73 = sphi 0, %s75
      %s76 = sphi 0, %s73
      %s77 = sphi 0, %s76
      %s93 = sphi 0, %s77
      %s97 = sphi 0, %s97
      %s99 = sphi 0, %s97
      %s100 = sphi 0, %s99
      %s114 = sphi 0, %s100
      %s118 = sphi 0, %s118
      %s120 = sphi 0, %s118
      %s121 = sphi 0, %s120
      %s135 = sphi 0, %s121
      %s139 = sphi 0, %s139
      %s141 = sphi 0, %s139
      %s142 = sphi 0, %s141
      %s156 = sphi 0, %s142
      %s160 = sphi 0, %s160
      %s162 = sphi 0, %s160
      %s163 = sphi 0, %s162
      %s177 = sphi 0, %s163
      %s183 = sphi 0, %s185
      %s186 = sphi 0, %s183
      %s187 = sphi 0, %s186
      %s203 = sphi 0, %s187
    $region4: #{tpu_custom_call.1} parent=1 // loop_header_branch
      %19 = sbr.rel (%p17) target = $region8
    $region5: #{tpu_custom_call.1} parent=1 // loop_body
      %s21 = ssub.s32 %s16, 1
      %s22 = ssub.s32 %s16, 2
      %s23 = sadd.s32 %s16, 1
      %s24 = ssub.s32 %s16, %s23
      %p25 = scmp.eq.s32.totalorder %s24, 0
      %s27 = sadd.s32 %s26, 1
      %s28 = scalar_select %p25, %s26, %s27
      %p31 = pneg %p25
      %p32 = scmp.eq.s32.totalorder %s16, 1
      %p33 = por %p31, %p32
      %p34 = scmp.ne.s32.totalorder %s26, %s29
      %p35 = scmp.eq.s32.totalorder %s16, 0
      %p36 = por %p34, %p35
      %p37 = scmp.ne.s32.totalorder %s26, %s29
      %p38 = scmp.eq.s32.totalorder %s21, 1
      %p39 = por %p37, %p38
      %p40 = scmp.ne.s32.totalorder %s29, %s30
      %p41 = scmp.eq.s32.totalorder %s21, 0
      %p42 = por %p40, %p41
      %p43 = scmp.ne.s32.totalorder %s29, %s30
      %p44 = scmp.eq.s32.totalorder %s22, 1
      %p45 = por %p43, %p44
      %p47 = scmp.ne.s32.totalorder %s30, %s46
      %p48 = scmp.eq.s32.totalorder %s22, 0
      %p49 = por %p47, %p48
      %s51 = sadd.s32 %s50, 1
      %p54 = scmp.eq.s32.totalorder %s16, 1
      %p55 = scmp.ne.s32.totalorder %s50, %s52
      %p56 = scmp.eq.s32.totalorder %s16, 0
      %p57 = por %p55, %p56
      %p58 = scmp.ne.s32.totalorder %s50, %s52
      %p59 = scmp.eq.s32.totalorder %s21, 1
      %p60 = por %p58, %p59
      %p61 = scmp.ne.s32.totalorder %s52, %s53
      %p62 = scmp.eq.s32.totalorder %s21, 0
      %p63 = por %p61, %p62
      %p64 = scmp.ne.s32.totalorder %s52, %s53
      %p65 = scmp.eq.s32.totalorder %s22, 1
      %p66 = por %p64, %p65
      %p68 = scmp.ne.s32.totalorder %s53, %s67
      %p69 = scmp.eq.s32.totalorder %s22, 0
      %p70 = por %p68, %p69
      %s71 = ssub.s32 %s16, %s23
      %p72 = scmp.eq.s32.totalorder %s71, 0
      %s74 = sadd.s32 %s73, 1
      %s75 = scalar_select %p72, %s73, %s74
      %p78 = pneg %p72
      %p79 = scmp.eq.s32.totalorder %s16, 1
      %p80 = por %p78, %p79
      %p81 = scmp.ne.s32.totalorder %s73, %s76
      %p82 = scmp.eq.s32.totalorder %s16, 0
      %p83 = por %p81, %p82
      %p84 = scmp.ne.s32.totalorder %s73, %s76
      %p85 = scmp.eq.s32.totalorder %s21, 1
      %p86 = por %p84, %p85
      %p87 = scmp.ne.s32.totalorder %s76, %s77
      %p88 = scmp.eq.s32.totalorder %s21, 0
      %p89 = por %p87, %p88
      %p90 = scmp.ne.s32.totalorder %s76, %s77
      %p91 = scmp.eq.s32.totalorder %s22, 1
      %p92 = por %p90, %p91
      %p94 = scmp.ne.s32.totalorder %s77, %s93
      %p95 = scmp.eq.s32.totalorder %s22, 0
      %p96 = por %p94, %p95
      %s98 = sadd.s32 %s97, 1
      %p101 = scmp.eq.s32.totalorder %s16, 1
      %p102 = scmp.ne.s32.totalorder %s97, %s99
      %p103 = scmp.eq.s32.totalorder %s16, 0
      %p104 = por %p102, %p103
      %p105 = scmp.ne.s32.totalorder %s97, %s99
      %p106 = scmp.eq.s32.totalorder %s21, 1
      %p107 = por %p105, %p106
      %p108 = scmp.ne.s32.totalorder %s99, %s100
      %p109 = scmp.eq.s32.totalorder %s21, 0
      %p110 = por %p108, %p109
      %p111 = scmp.ne.s32.totalorder %s99, %s100
      %p112 = scmp.eq.s32.totalorder %s22, 1
      %p113 = por %p111, %p112
      %p115 = scmp.ne.s32.totalorder %s100, %s114
      %p116 = scmp.eq.s32.totalorder %s22, 0
      %p117 = por %p115, %p116
      %s119 = sadd.s32 %s118, 1
      %p122 = scmp.eq.s32.totalorder %s16, 1
      %p123 = scmp.ne.s32.totalorder %s118, %s120
      %p124 = scmp.eq.s32.totalorder %s16, 0
      %p125 = por %p123, %p124
      %p126 = scmp.ne.s32.totalorder %s118, %s120
      %p127 = scmp.eq.s32.totalorder %s21, 1
      %p128 = por %p126, %p127
      %p129 = scmp.ne.s32.totalorder %s120, %s121
      %p130 = scmp.eq.s32.totalorder %s21, 0
      %p131 = por %p129, %p130
      %p132 = scmp.ne.s32.totalorder %s120, %s121
      %p133 = scmp.eq.s32.totalorder %s22, 1
      %p134 = por %p132, %p133
      %p136 = scmp.ne.s32.totalorder %s121, %s135
      %p137 = scmp.eq.s32.totalorder %s22, 0
      %p138 = por %p136, %p137
      %s140 = sadd.s32 %s139, 1
      %p143 = scmp.eq.s32.totalorder %s16, 1
      %p144 = scmp.ne.s32.totalorder %s139, %s141
      %p145 = scmp.eq.s32.totalorder %s16, 0
      %p146 = por %p144, %p145
      %p147 = scmp.ne.s32.totalorder %s139, %s141
      %p148 = scmp.eq.s32.totalorder %s21, 1
      %p149 = por %p147, %p148
      %p150 = scmp.ne.s32.totalorder %s141, %s142
      %p151 = scmp.eq.s32.totalorder %s21, 0
      %p152 = por %p150, %p151
      %p153 = scmp.ne.s32.totalorder %s141, %s142
      %p154 = scmp.eq.s32.totalorder %s22, 1
      %p155 = por %p153, %p154
      %p157 = scmp.ne.s32.totalorder %s142, %s156
      %p158 = scmp.eq.s32.totalorder %s22, 0
      %p159 = por %p157, %p158
      %s161 = sadd.s32 %s160, 1
      %p164 = scmp.eq.s32.totalorder %s16, 1
      %p165 = scmp.ne.s32.totalorder %s160, %s162
      %p166 = scmp.eq.s32.totalorder %s16, 0
      %p167 = por %p165, %p166
      %p168 = scmp.ne.s32.totalorder %s160, %s162
      %p169 = scmp.eq.s32.totalorder %s21, 1
      %p170 = por %p168, %p169
      %p171 = scmp.ne.s32.totalorder %s162, %s163
      %p172 = scmp.eq.s32.totalorder %s21, 0
      %p173 = por %p171, %p172
      %p174 = scmp.ne.s32.totalorder %s162, %s163
      %p175 = scmp.eq.s32.totalorder %s22, 1
      %p176 = por %p174, %p175
      %p178 = scmp.ne.s32.totalorder %s163, %s177
      %p179 = scmp.eq.s32.totalorder %s22, 0
      %p180 = por %p178, %p179
      %s181 = ssub.s32 %s16, %s23
      %p182 = scmp.eq.s32.totalorder %s181, 0
      %s184 = sadd.s32 %s183, 1
      %s185 = scalar_select %p182, %s183, %s184
      %p188 = pneg %p182
      %p189 = scmp.eq.s32.totalorder %s16, 1
      %p190 = por %p188, %p189
      %p191 = scmp.ne.s32.totalorder %s183, %s186
      %p192 = scmp.eq.s32.totalorder %s16, 0
      %p193 = por %p191, %p192
      %p194 = scmp.ne.s32.totalorder %s183, %s186
      %p195 = scmp.eq.s32.totalorder %s21, 1
      %p196 = por %p194, %p195
      %p197 = scmp.ne.s32.totalorder %s186, %s187
      %p198 = scmp.eq.s32.totalorder %s21, 0
      %p199 = por %p197, %p198
      %p200 = scmp.ne.s32.totalorder %s186, %s187
      %p201 = scmp.eq.s32.totalorder %s22, 1
      %p202 = por %p200, %p201
      %p204 = scmp.ne.s32.totalorder %s187, %s203
      %p205 = scmp.eq.s32.totalorder %s22, 0
      %p206 = por %p204, %p205
      %p207 = scmp.le.s32.totalorder 1, %s16
      %p208 = scmp.lt.s32.totalorder %s16, 3
      %p209 = pnand %p207, %p208
      %p210 = pneg %p209
      // Predicated region
      $region9: #{tpu_custom_call.1} parent=5 // pred_check
        _
      $region10: #{tpu_custom_call.1} parent=5 // pred_check_branch
        %212 = sbr.rel (%p209) target = $region12
      $region11: #{tpu_custom_call.1} parent=5 // pred_region
        %s213 = ssub.s32 %s16, 1
        // Predicated region
        $region13: #{tpu_custom_call.1} parent=11 // pred_check
          %p214 = pneg %p63
        $region14: #{tpu_custom_call.1} parent=11 // pred_check_branch
          %216 = sbr.rel (%p214) target = $region16
        $region15: #{tpu_custom_call.1} parent=11 // pred_region
          _
        $region16: #{tpu_custom_call.1} parent=11 // pred_fallthru
          _
        // Predicated region
        $region17: #{tpu_custom_call.1} parent=11 // pred_check
          %p217 = pneg %p110
        $region18: #{tpu_custom_call.1} parent=11 // pred_check_branch
          %219 = sbr.rel (%p217) target = $region20
        $region19: #{tpu_custom_call.1} parent=11 // pred_region
          _
        $region20: #{tpu_custom_call.1} parent=11 // pred_fallthru
          _
        // Predicated region
        $region21: #{tpu_custom_call.1} parent=11 // pred_check
          %p220 = pneg %p131
        $region22: #{tpu_custom_call.1} parent=11 // pred_check_branch
          %222 = sbr.rel (%p220) target = $region24
        $region23: #{tpu_custom_call.1} parent=11 // pred_region
          _
        $region24: #{tpu_custom_call.1} parent=11 // pred_fallthru
          _
        // Predicated region
        $region25: #{tpu_custom_call.1} parent=11 // pred_check
          %p223 = pneg %p152
        $region26: #{tpu_custom_call.1} parent=11 // pred_check_branch
          %225 = sbr.rel (%p223) target = $region28
        $region27: #{tpu_custom_call.1} parent=11 // pred_region
          _
        $region28: #{tpu_custom_call.1} parent=11 // pred_fallthru
          _
        // Predicated region
        $region29: #{tpu_custom_call.1} parent=11 // pred_check
          %p226 = pneg %p173
        $region30: #{tpu_custom_call.1} parent=11 // pred_check_branch
          %228 = sbr.rel (%p226) target = $region32
        $region31: #{tpu_custom_call.1} parent=11 // pred_region
          _
        $region32: #{tpu_custom_call.1} parent=11 // pred_fallthru
          _
      $region12: #{tpu_custom_call.1} parent=5 // pred_fallthru
        _
      %p229 = scmp.lt.s32.totalorder %s16, 2
      // Predicated region
      $region33: #{tpu_custom_call.1} parent=5 // pred_check
        %p230 = pneg %p229
      $region34: #{tpu_custom_call.1} parent=5 // pred_check_branch
        %232 = sbr.rel (%p230) target = $region36
      $region35: #{tpu_custom_call.1} parent=5 // pred_region
        // Predicated region
        $region37: #{tpu_custom_call.1} parent=35 // pred_check
          %p233 = pneg %p36
        $region38: #{tpu_custom_call.1} parent=35 // pred_check_branch
          %235 = sbr.rel (%p233) target = $region40
        $region39: #{tpu_custom_call.1} parent=35 // pred_region
          %p236 = scmp.lt.s32.totalorder %s16, 1
          %s237 = scalar_select %p236, %s16, 1
          %s238 = smul.addr %s237, 8
          %s239 = smul.addr %s238, 8
          %s240 = scalar_lea.vmem %s0, %s239
        $region40: #{tpu_custom_call.1} parent=35 // pred_fallthru
          _
        // Predicated region
        $region41: #{tpu_custom_call.1} parent=35 // pred_check
          %p241 = pneg %p83
        $region42: #{tpu_custom_call.1} parent=35 // pred_check_branch
          %243 = sbr.rel (%p241) target = $region44
        $region43: #{tpu_custom_call.1} parent=35 // pred_region
          %p244 = scmp.lt.s32.totalorder %s16, 1
          %s245 = scalar_select %p244, %s16, 1
          %s246 = smul.addr %s245, 4
          %s247 = smul.addr %s246, 8
          %s248 = scalar_lea.vmem %s2, %s247
        $region44: #{tpu_custom_call.1} parent=35 // pred_fallthru
          _
      $region36: #{tpu_custom_call.1} parent=5 // pred_fallthru
        _
      %p249 = scmp.le.s32.totalorder 1, %s16
      %p250 = scmp.lt.s32.totalorder %s16, 3
      %p251 = pnand %p249, %p250
      %p252 = pneg %p251
      // Predicated region
      $region45: #{tpu_custom_call.1} parent=5 // pred_check
        _
      $region46: #{tpu_custom_call.1} parent=5 // pred_check_branch
        %254 = sbr.rel (%p251) target = $region48
      $region47: #{tpu_custom_call.1} parent=5 // pred_region
        %s255 = ssub.s32 %s16, 1
        %p256 = scmp.lt.s32.totalorder %s21, 1
        %s257 = scalar_select %p256, %s21, 1
        %s258 = smul.addr %s257, 8
        %s259 = smul.addr %s258, 8
        %s260 = scalar_lea.vmem %s0, %s259
        %p261 = pneg %p42
        %p262 = pneg %p39
        %p263 = pneg %p63
        %p264 = pneg %p60
        %p265 = scmp.lt.s32.totalorder %s21, 1
        %s266 = scalar_select %p265, %s21, 1
        %s267 = smul.addr %s266, 4
        %s268 = smul.addr %s267, 8
        %s269 = scalar_lea.vmem %s2, %s268
        %p270 = pneg %p89
        %p271 = pneg %p86
        %p272 = pneg %p110
        %p273 = pneg %p107
        %p274 = pneg %p131
        %p275 = pneg %p128
        %p276 = pneg %p152
        %p277 = pneg %p149
        %p278 = pneg %p173
        %p279 = pneg %p170
        %p280 = pneg %p199
        %p281 = pneg %p196
        %s282 = sand.u32 %s186, 1
        %s283 = scalar_lea.sflag [#allocation3], %s282
        %s284 = sand.u32 %s186, 1
        %s285 = smul.addr %s284, 64
        %s286 = scalar_lea.vmem [#allocation2], %s285
        %p287 = scmp.lt.s32.totalorder %s21, 1
        %s288 = scalar_select %p287, %s21, 1
        %s289 = smul.addr %s288, 8
        %s290 = smul.addr %s289, 8
        %s291 = scalar_lea.vmem %s0, %s290
        %p292 = scmp.lt.s32.totalorder %s21, 1
        %s293 = scalar_select %p292, %s21, 1
        %s294 = smul.addr %s293, 4
        %s295 = smul.addr %s294, 8
        %s296 = scalar_lea.vmem %s2, %s295
        %v297 = vld [vmem:[%s3] sm:$0xff]
        %v298 = vld [vmem:[%s3 + $0x8] sm:$0xff]
        %v299 = vld [vmem:[%s3 + $0x10] sm:$0xff]
        %v300 = vld [vmem:[%s3 + $0x18] sm:$0xff]
        %v301 = vld [vmem:[%s3 + $0x20] sm:$0xff]
        %v302 = vld [vmem:[%s3 + $0x28] sm:$0xff]
        %v303 = vld [vmem:[%s3 + $0x30] sm:$0xff]
        %v304 = vld [vmem:[%s3 + $0x38] sm:$0xff]
        %v305 = vld [vmem:[%s3 + $0x40] sm:$0xff]
        %v306 = vld [vmem:[%s3 + $0x48] sm:$0xff]
        %v307 = vld [vmem:[%s3 + $0x50] sm:$0xff]
        %v308 = vld [vmem:[%s6] sm:$0xff]
        %v309 = vld [vmem:[%s6 + $0x8] sm:$0xff]
        %v310 = vld [vmem:[%s6 + $0x10] sm:$0xff]
        %v311 = vld [vmem:[%s6 + $0x18] sm:$0xff]
        %v312 = vld [vmem:[%s6 + $0x20] sm:$0xff]
        %v313 = vld [vmem:[%s6 + $0x28] sm:$0xff]
        %v314 = vld [vmem:[%s6 + $0x30] sm:$0xff]
        %v315 = vld [vmem:[%s6 + $0x38] sm:$0xff]
        %v316 = vld [vmem:[%s1] sm:$0xff]
        %v317 = vld [vmem:[%s1 + $0x8] sm:$0xff]
        %v318 = vld [vmem:[%s1 + $0x10] sm:$0xff]
        %v319 = vld [vmem:[%s1 + $0x18] sm:$0xff]
        %v320 = vld [vmem:[%s1 + $0x20] sm:$0xff]
        %v321 = vld [vmem:[%s1 + $0x28] sm:$0xff]
        %v322 = vld [vmem:[%s1 + $0x30] sm:$0xff]
        %v323 = vld [vmem:[%s1 + $0x38] sm:$0xff]
        %v324 = vld [vmem:[%s291] sm:$0xff]
        %v325 = vld [vmem:[%s291 + $0x8] sm:$0xff]
        %v326 = vld [vmem:[%s291 + $0x10] sm:$0xff]
        %v327 = vld [vmem:[%s291 + $0x18] sm:$0xff]
        %v328 = vld [vmem:[%s291 + $0x20] sm:$0xff]
        %v329 = vld [vmem:[%s291 + $0x28] sm:$0xff]
        %v330 = vld [vmem:[%s291 + $0x30] sm:$0xff]
        %v331 = vld [vmem:[%s291 + $0x38] sm:$0xff]
        %v332 = vadd.f32 %v324, %v316
        %v333 = vadd.f32 %v325, %v317
        %v334 = vadd.f32 %v326, %v318
        %v335 = vadd.f32 %v327, %v319
        %v336 = vadd.f32 %v328, %v320
        %v337 = vadd.f32 %v329, %v321
        %v338 = vadd.f32 %v330, %v322
        %v339 = vadd.f32 %v331, %v323
        %v340 = vld [vmem:[%s296] sm:$0xff]
        %v341 = vld [vmem:[%s296 + $0x8] sm:$0xff]
        %v342 = vld [vmem:[%s296 + $0x10] sm:$0xff]
        %v343 = vld [vmem:[%s296 + $0x18] sm:$0xff]
        %v344 = vadd.f32 %v332, %v334
        %v345 = vadd.f32 %v344, %v336
        %v346 = vadd.f32 %v345, %v338
        %v347 = vrot.slane %v346, 4
        %v348 = vadd.f32 %v346, %v347
        %v349 = vrot.slane %v348, 2
        %v350 = vadd.f32 %v348, %v349
        %v351 = vrot.slane %v350, 1
        %v352 = vadd.f32 %v350, %v351
        %v353 = vadd.f32 %v333, %v335
        %v354 = vadd.f32 %v353, %v337
        %v355 = vadd.f32 %v354, %v339
        %v356 = vrot.slane %v355, 4
        %v357 = vadd.f32 %v355, %v356
        %v358 = vrot.slane %v357, 2
        %v359 = vadd.f32 %v357, %v358
        %v360 = vrot.slane %v359, 1
        %v361 = vadd.f32 %v359, %v360
        %v362 = vrcp.pop 32.0
        %v363 = vmul.f32 32.0, %v362
        %v364 = vsub.f32 1.0, %v363
        %v365 = vmul.f32 %v362, %v364
        %v366 = vadd.f32 %v362, %v365
        %vm367 = vweird.f32 %v362
        %v368 = vsel %vm367, %v362, %v366
        %v369 = vmul.f32 %v352, %v368
        %v370 = vmul.f32 %v361, %v368
        %v371 = vsub.f32 %v332, %v369
        %v372 = vsub.f32 %v333, %v370
        %v373 = vsub.f32 %v334, %v369
        %v374 = vsub.f32 %v335, %v370
        %v375 = vsub.f32 %v336, %v369
        %v376 = vsub.f32 %v337, %v370
        %v377 = vsub.f32 %v338, %v369
        %v378 = vsub.f32 %v339, %v370
        %v379 = vmul.f32 %v371, %v371
        %v380 = vmul.f32 %v372, %v372
        %v381 = vmul.f32 %v373, %v373
        %v382 = vmul.f32 %v374, %v374
        %v383 = vmul.f32 %v375, %v375
        %v384 = vmul.f32 %v376, %v376
        %v385 = vmul.f32 %v377, %v377
        %v386 = vmul.f32 %v378, %v378
        %v387 = vadd.f32 %v379, %v381
        %v388 = vadd.f32 %v387, %v383
        %v389 = vadd.f32 %v388, %v385
        %v390 = vrot.slane %v389, 4
        %v391 = vadd.f32 %v389, %v390
        %v392 = vrot.slane %v391, 2
        %v393 = vadd.f32 %v391, %v392
        %v394 = vrot.slane %v393, 1
        %v395 = vadd.f32 %v393, %v394
        %v396 = vadd.f32 %v380, %v382
        %v397 = vadd.f32 %v396, %v384
        %v398 = vadd.f32 %v397, %v386
        %v399 = vrot.slane %v398, 4
        %v400 = vadd.f32 %v398, %v399
        %v401 = vrot.slane %v400, 2
        %v402 = vadd.f32 %v400, %v401
        %v403 = vrot.slane %v402, 1
        %v404 = vadd.f32 %v402, %v403
        %v405 = vmul.f32 %v395, %v368
        %v406 = vmul.f32 %v404, %v368
        %v407 = vadd.f32 %v405, 1e-05
        %v408 = vadd.f32 %v406, 1e-05
        %v409 = vrsqrt.pop %v407
        %v410 = vmul.f32 %v409, %v407
        %v411 = vmul.f32 %v410, %v409
        %v412 = vmul.f32 0.5, %v411
        %v413 = vsub.f32 1.5, %v412
        %v414 = vmul.f32 %v409, %v413
        %vm415 = vweird.f32 %v407
        %vm416 = vweird.f32 %v409
        %vm417 = vmor %vm415, %vm416
        %v418 = vsel %vm417, %v409, %v414
        %v419 = vrsqrt.pop %v408
        %v420 = vmul.f32 %v419, %v408
        %v421 = vmul.f32 %v420, %v419
        %v422 = vmul.f32 0.5, %v421
        %v423 = vsub.f32 1.5, %v422
        %v424 = vmul.f32 %v419, %v423
        %vm425 = vweird.f32 %v408
        %vm426 = vweird.f32 %v419
        %vm427 = vmor %vm425, %vm426
        %v428 = vsel %vm427, %v419, %v424
        %v429 = vmul.f32 %v371, %v418
        %v430 = vmul.f32 %v372, %v428
        %v431 = vmul.f32 %v373, %v418
        %v432 = vmul.f32 %v374, %v428
        %v433 = vmul.f32 %v375, %v418
        %v434 = vmul.f32 %v376, %v428
        %v435 = vmul.f32 %v377, %v418
        %v436 = vmul.f32 %v378, %v428
        %438 = vset.pattern.permute.xlu0 0
        %439 = vperm.xlu0 %438, %v308
        %v440 = vpop.permute.xlu0 %439
        %443 = vset.pattern.permute.xlu0 0
        %444 = vperm.xlu0 %443, %v309
        %v445 = vpop.permute.xlu0 %444
        %448 = vset.pattern.permute.xlu0 0
        %449 = vperm.xlu0 %448, %v310
        %v450 = vpop.permute.xlu0 %449
        %453 = vset.pattern.permute.xlu0 0
        %454 = vperm.xlu0 %453, %v311
        %v455 = vpop.permute.xlu0 %454
        %v457 = vmul.f32 %v429, %v440
        %v458 = vmul.f32 %v430, %v440
        %v459 = vmul.f32 %v431, %v445
        %v460 = vmul.f32 %v432, %v445
        %v461 = vmul.f32 %v433, %v450
        %v462 = vmul.f32 %v434, %v450
        %v463 = vmul.f32 %v435, %v455
        %v464 = vmul.f32 %v436, %v455
        %465 = vset.pattern.permute.xlu0 1
        %466 = vperm.xlu0 %465, %v308
        %v467 = vpop.permute.xlu0 %466
        %469 = vset.pattern.permute.xlu0 1
        %470 = vperm.xlu0 %469, %v309
        %v471 = vpop.permute.xlu0 %470
        %473 = vset.pattern.permute.xlu0 1
        %474 = vperm.xlu0 %473, %v310
        %v475 = vpop.permute.xlu0 %474
        %477 = vset.pattern.permute.xlu0 1
        %478 = vperm.xlu0 %477, %v311
        %v479 = vpop.permute.xlu0 %478
        %v481 = vadd.f32 %v457, %v467
        %v482 = vadd.f32 %v458, %v467
        %v483 = vadd.f32 %v459, %v471
        %v484 = vadd.f32 %v460, %v471
        %v485 = vadd.f32 %v461, %v475
        %v486 = vadd.f32 %v462, %v475
        %v487 = vadd.f32 %v463, %v479
        %v488 = vadd.f32 %v464, %v479
        %vm489 = vcmask 64512
        %v490 = vsel %vm489, %v340, 0.0
        %v491 = vsel %vm489, %v341, 0.0
        %v492 = vadd.f32 %v490, %v491
        %v493 = vsel %vm489, %v342, 0.0
        %v494 = vadd.f32 %v492, %v493
        %v495 = vsel %vm489, %v343, 0.0
        %v496 = vadd.f32 %v494, %v495
        %v497 = vrot.slane %v496, 4
        %v498 = vadd.f32 %v496, %v497
        %v499 = vrot.slane %v498, 2
        %v500 = vadd.f32 %v498, %v499
        %v501 = vrot.slane %v500, 1
        %v502 = vadd.f32 %v500, %v501
        %v503 = vmul.f32 %v502, %v368
        %v504 = vsub.f32 %v340, %v503
        %v505 = vsub.f32 %v341, %v503
        %v506 = vsub.f32 %v342, %v503
        %v507 = vsub.f32 %v343, %v503
        %v508 = vmul.f32 %v504, %v504
        %v509 = vmul.f32 %v505, %v505
        %v510 = vmul.f32 %v506, %v506
        %v511 = vmul.f32 %v507, %v507
        %v512 = vsel %vm489, %v508, 0.0
        %v513 = vsel %vm489, %v509, 0.0
        %v514 = vadd.f32 %v512, %v513
        %v515 = vsel %vm489, %v510, 0.0
        %v516 = vadd.f32 %v514, %v515
        %v517 = vsel %vm489, %v511, 0.0
        %v518 = vadd.f32 %v516, %v517
        %v519 = vrot.slane %v518, 4
        %v520 = vadd.f32 %v518, %v519
        %v521 = vrot.slane %v520, 2
        %v522 = vadd.f32 %v520, %v521
        %v523 = vrot.slane %v522, 1
        %v524 = vadd.f32 %v522, %v523
        %v525 = vmul.f32 %v524, %v368
        %v526 = vadd.f32 %v525, 1e-05
        %v527 = vrsqrt.pop %v526
        %v528 = vmul.f32 %v527, %v526
        %v529 = vmul.f32 %v528, %v527
        %v530 = vmul.f32 0.5, %v529
        %v531 = vsub.f32 1.5, %v530
        %v532 = vmul.f32 %v527, %v531
        %vm533 = vweird.f32 %v526
        %vm534 = vweird.f32 %v527
        %vm535 = vmor %vm533, %vm534
        %v536 = vsel %vm535, %v527, %v532
        %v537 = vmul.f32 %v504, %v536
        %v538 = vmul.f32 %v505, %v536
        %v539 = vmul.f32 %v506, %v536
        %v540 = vmul.f32 %v507, %v536
        %v541 = vmul.f32 %v537, %v440
        %v542 = vmul.f32 %v538, %v445
        %v543 = vmul.f32 %v539, %v450
        %v544 = vmul.f32 %v540, %v455
        %v545 = vadd.f32 %v541, %v467
        %v546 = vadd.f32 %v542, %v471
        %v547 = vadd.f32 %v543, %v475
        %v548 = vadd.f32 %v544, %v479
        %vm549 = vcmask 261120
        %v551 = vsel %vm549, %v297, 0
        %553 = vmatpush.msra.mxu0 0.0
        %554 = vmatpush.msra.mxu0 0.0
        %555 = vmatpush.msra.mxu0 0.0
        %556 = vmatpush.msra.mxu0 0.0
        %557 = vmatpush.msra.mxu0 0.0
        %558 = vmatpush.msra.mxu0 0.0
        %559 = vmatpush.msra.mxu0 0.0
        %560 = vmatpush.msra.mxu0 0.0
        %561 = vmatpush.msra.mxu0 0.0
        %562 = vmatpush.msra.mxu0 0.0
        %563 = vmatpush.msra.mxu0 0.0
        %564 = vmatpush.msra.mxu0 0.0
        %565 = vmatpush.msra.mxu0 %v487
        %566 = vmatpush.msra.mxu0 %v485
        %567 = vmatpush.msra.mxu0 %v483
        %568 = vmatpush.msra.mxu0 %v481
        %569 = vmatmul.f32.gmra.mxu0 %v551
        %v570 = vpop.f32.mrf.mxu0
        %v571 = vadd.f32 0.0, %v570
        %572 = vdwg.mxu0
        %573 = vmatpush.msra.mxu0 0.0
        %574 = vmatpush.msra.mxu0 0.0
        %575 = vmatpush.msra.mxu0 0.0
        %576 = vmatpush.msra.mxu0 0.0
        %577 = vmatpush.msra.mxu0 0.0
        %578 = vmatpush.msra.mxu0 0.0
        %579 = vmatpush.msra.mxu0 0.0
        %580 = vmatpush.msra.mxu0 0.0
        %581 = vmatpush.msra.mxu0 0.0
        %582 = vmatpush.msra.mxu0 0.0
        %583 = vmatpush.msra.mxu0 0.0
        %584 = vmatpush.msra.mxu0 0.0
        %585 = vmatpush.msra.mxu0 %v488
        %586 = vmatpush.msra.mxu0 %v486
        %587 = vmatpush.msra.mxu0 %v484
        %588 = vmatpush.msra.mxu0 %v482
        %589 = vmatmul.f32.gmra.mxu0 %v551
        %v590 = vpop.f32.mrf.mxu0
        %v591 = vadd.f32 0.0, %v590
        %592 = vdwg.mxu0
        %v594 = vsel %vm549, %v298, 0
        %v597 = vsel %vm549, %v299, 0
        %599 = vmatpush.msra.mxu0 0.0
        %600 = vmatpush.msra.mxu0 0.0
        %601 = vmatpush.msra.mxu0 0.0
        %602 = vmatpush.msra.mxu0 0.0
        %603 = vmatpush.msra.mxu0 0.0
        %604 = vmatpush.msra.mxu0 0.0
        %605 = vmatpush.msra.mxu0 0.0
        %606 = vmatpush.msra.mxu0 0.0
        %607 = vmatpush.msra.mxu0 0.0
        %608 = vmatpush.msra.mxu0 0.0
        %609 = vmatpush.msra.mxu0 0.0
        %610 = vmatpush.msra.mxu0 0.0
        %611 = vmatpush.msra.mxu0 %v548
        %612 = vmatpush.msra.mxu0 %v547
        %613 = vmatpush.msra.mxu0 %v546
        %614 = vmatpush.msra.mxu0 %v545
        %615 = vmatmul.f32.gmra.mxu0 %v594
        %v616 = vpop.f32.mrf.mxu0
        %v617 = vadd.f32 0.0, %v616
        %618 = vmatmul.f32.gmra.mxu0 %v597
        %v619 = vpop.f32.mrf.mxu0
        %v620 = vadd.f32 0.0, %v619
        %621 = vdwg.mxu0
        %623 = vset.pattern.permute.xlu0 0
        %624 = vperm.xlu0 %623, %v617
        %v625 = vpop.permute.xlu0 %624
        %v627 = vmul.f32 %v625, %v571
        %v628 = vmul.f32 %v625, %v591
        %629 = vset.pattern.permute.xlu0 1
        %630 = vperm.xlu0 %629, %v617
        %v631 = vpop.permute.xlu0 %630
        %v633 = vmul.f32 %v631, %v571
        %v634 = vmul.f32 %v631, %v591
        %635 = vset.pattern.permute.xlu0 2
        %636 = vperm.xlu0 %635, %v617
        %v637 = vpop.permute.xlu0 %636
        %v639 = vmul.f32 %v637, %v571
        %v640 = vmul.f32 %v637, %v591
        %641 = vset.pattern.permute.xlu0 3
        %642 = vperm.xlu0 %641, %v617
        %v643 = vpop.permute.xlu0 %642
        %v645 = vmul.f32 %v643, %v571
        %v646 = vmul.f32 %v643, %v591
        %647 = vset.pattern.permute.xlu0 4
        %648 = vperm.xlu0 %647, %v617
        %v649 = vpop.permute.xlu0 %648
        %v651 = vmul.f32 %v649, %v571
        %v652 = vmul.f32 %v649, %v591
        %653 = vset.pattern.permute.xlu0 5
        %654 = vperm.xlu0 %653, %v617
        %v655 = vpop.permute.xlu0 %654
        %v657 = vmul.f32 %v655, %v571
        %v658 = vmul.f32 %v655, %v591
        %659 = vset.pattern.permute.xlu0 6
        %660 = vperm.xlu0 %659, %v617
        %v661 = vpop.permute.xlu0 %660
        %v663 = vmul.f32 %v661, %v571
        %v664 = vmul.f32 %v661, %v591
        %665 = vset.pattern.permute.xlu0 7
        %666 = vperm.xlu0 %665, %v617
        %v667 = vpop.permute.xlu0 %666
        %v669 = vmul.f32 %v667, %v571
        %v670 = vmul.f32 %v667, %v591
        %v671 = vmax.f32 %v627, %v633
        %v672 = vmax.f32 %v628, %v634
        %v673 = vmax.f32 %v671, %v639
        %v674 = vmax.f32 %v672, %v640
        %v675 = vmax.f32 %v673, %v645
        %v676 = vmax.f32 %v674, %v646
        %v677 = vmax.f32 %v675, %v651
        %v678 = vmax.f32 %v676, %v652
        %v679 = vmax.f32 %v677, %v657
        %v680 = vmax.f32 %v678, %v658
        %v681 = vmax.f32 %v679, %v663
        %v682 = vmax.f32 %v680, %v664
        %v683 = vmax.f32 %v681, %v669
        %v684 = vmax.f32 %v682, %v670
        %v685 = vsub.f32 %v627, %v683
        %v686 = vsub.f32 %v628, %v684
        %v687 = vmul.f32 %v685, 1.442695
        %v688 = vpow.pop %v687
        %v689 = vmul.f32 %v686, 1.442695
        %v690 = vpow.pop %v689
        %692 = vset.pattern.permute.xlu0 0
        %693 = vperm.xlu0 %692, %v620
        %v694 = vpop.permute.xlu0 %693
        %v696 = vmul.f32 %v688, %v694
        %v697 = vmul.f32 %v690, %v694
        %v698 = vsub.f32 %v633, %v683
        %v699 = vsub.f32 %v634, %v684
        %v700 = vmul.f32 %v698, 1.442695
        %v701 = vpow.pop %v700
        %v702 = vmul.f32 %v699, 1.442695
        %v703 = vpow.pop %v702
        %704 = vset.pattern.permute.xlu0 1
        %705 = vperm.xlu0 %704, %v620
        %v706 = vpop.permute.xlu0 %705
        %v708 = vmul.f32 %v701, %v706
        %v709 = vmul.f32 %v703, %v706
        %v710 = vadd.f32 %v696, %v708
        %v711 = vadd.f32 %v697, %v709
        %v712 = vadd.f32 %v688, %v701
        %v713 = vadd.f32 %v690, %v703
        %v714 = vsub.f32 %v639, %v683
        %v715 = vsub.f32 %v640, %v684
        %v716 = vmul.f32 %v714, 1.442695
        %v717 = vpow.pop %v716
        %v718 = vmul.f32 %v715, 1.442695
        %v719 = vpow.pop %v718
        %720 = vset.pattern.permute.xlu0 2
        %721 = vperm.xlu0 %720, %v620
        %v722 = vpop.permute.xlu0 %721
        %v724 = vmul.f32 %v717, %v722
        %v725 = vmul.f32 %v719, %v722
        %v726 = vadd.f32 %v710, %v724
        %v727 = vadd.f32 %v711, %v725
        %v728 = vadd.f32 %v712, %v717
        %v729 = vadd.f32 %v713, %v719
        %v730 = vsub.f32 %v645, %v683
        %v731 = vsub.f32 %v646, %v684
        %v732 = vmul.f32 %v730, 1.442695
        %v733 = vpow.pop %v732
        %v734 = vmul.f32 %v731, 1.442695
        %v735 = vpow.pop %v734
        %736 = vset.pattern.permute.xlu0 3
        %737 = vperm.xlu0 %736, %v620
        %v738 = vpop.permute.xlu0 %737
        %v740 = vmul.f32 %v733, %v738
        %v741 = vmul.f32 %v735, %v738
        %v742 = vadd.f32 %v726, %v740
        %v743 = vadd.f32 %v727, %v741
        %v744 = vadd.f32 %v728, %v733
        %v745 = vadd.f32 %v729, %v735
        %v746 = vsub.f32 %v651, %v683
        %v747 = vsub.f32 %v652, %v684
        %v748 = vmul.f32 %v746, 1.442695
        %v749 = vpow.pop %v748
        %v750 = vmul.f32 %v747, 1.442695
        %v751 = vpow.pop %v750
        %752 = vset.pattern.permute.xlu0 4
        %753 = vperm.xlu0 %752, %v620
        %v754 = vpop.permute.xlu0 %753
        %v756 = vmul.f32 %v749, %v754
        %v757 = vmul.f32 %v751, %v754
        %v758 = vadd.f32 %v742, %v756
        %v759 = vadd.f32 %v743, %v757
        %v760 = vadd.f32 %v744, %v749
        %v761 = vadd.f32 %v745, %v751
        %v762 = vsub.f32 %v657, %v683
        %v763 = vsub.f32 %v658, %v684
        %v764 = vmul.f32 %v762, 1.442695
        %v765 = vpow.pop %v764
        %v766 = vmul.f32 %v763, 1.442695
        %v767 = vpow.pop %v766
        %768 = vset.pattern.permute.xlu0 5
        %769 = vperm.xlu0 %768, %v620
        %v770 = vpop.permute.xlu0 %769
        %v772 = vmul.f32 %v765, %v770
        %v773 = vmul.f32 %v767, %v770
        %v774 = vadd.f32 %v758, %v772
        %v775 = vadd.f32 %v759, %v773
        %v776 = vadd.f32 %v760, %v765
        %v777 = vadd.f32 %v761, %v767
        %v778 = vsub.f32 %v663, %v683
        %v779 = vsub.f32 %v664, %v684
        %v780 = vmul.f32 %v778, 1.442695
        %v781 = vpow.pop %v780
        %v782 = vmul.f32 %v779, 1.442695
        %v783 = vpow.pop %v782
        %784 = vset.pattern.permute.xlu0 6
        %785 = vperm.xlu0 %784, %v620
        %v786 = vpop.permute.xlu0 %785
        %v788 = vmul.f32 %v781, %v786
        %v789 = vmul.f32 %v783, %v786
        %v790 = vadd.f32 %v774, %v788
        %v791 = vadd.f32 %v775, %v789
        %v792 = vadd.f32 %v776, %v781
        %v793 = vadd.f32 %v777, %v783
        %v794 = vsub.f32 %v669, %v683
        %v795 = vsub.f32 %v670, %v684
        %v796 = vmul.f32 %v794, 1.442695
        %v797 = vpow.pop %v796
        %v798 = vmul.f32 %v795, 1.442695
        %v799 = vpow.pop %v798
        %800 = vset.pattern.permute.xlu0 7
        %801 = vperm.xlu0 %800, %v620
        %v802 = vpop.permute.xlu0 %801
        %v804 = vmul.f32 %v797, %v802
        %v805 = vmul.f32 %v799, %v802
        %v806 = vadd.f32 %v790, %v804
        %v807 = vadd.f32 %v791, %v805
        %v808 = vadd.f32 %v792, %v797
        %v809 = vadd.f32 %v793, %v799
        %v810 = vrcp.pop %v808
        %v811 = vrcp.pop %v809
        %v812 = vmul.f32 %v806, %v810
        %v813 = vmul.f32 %v807, %v811
        %v814 = vld [vmem:[%s4] sm:$0xff]
        %v815 = vld [vmem:[%s4 + $0x8] sm:$0xff]
        %v816 = vld [vmem:[%s4 + $0x10] sm:$0xff]
        %v817 = vld [vmem:[%s4 + $0x18] sm:$0xff]
        %v819 = vsel %vm489, %v814, 0
        %v822 = vsel %vm489, %v815, 0
        %v825 = vsel %vm489, %v816, 0
        %v828 = vsel %vm489, %v817, 0
        %830 = vmatpush.msra.mxu0 0.0
        %831 = vmatpush.msra.mxu0 0.0
        %832 = vmatpush.msra.mxu0 0.0
        %833 = vmatpush.msra.mxu0 0.0
        %834 = vmatpush.msra.mxu0 0.0
        %835 = vmatpush.msra.mxu0 0.0
        %836 = vmatpush.msra.mxu0 0.0
        %837 = vmatpush.msra.mxu0 0.0
        %838 = vmatpush.msra.mxu0 0.0
        %839 = vmatpush.msra.mxu0 0.0
        %840 = vmatpush.msra.mxu0 0.0
        %841 = vmatpush.msra.mxu0 0.0
        %842 = vmatpush.msra.mxu0 0.0
        %843 = vmatpush.msra.mxu0 0.0
        %844 = vmatpush.msra.mxu0 0.0
        %845 = vmatpush.msra.mxu0 %v812
        %846 = vmatmul.f32.gmra.mxu0 %v819
        %v847 = vpop.f32.mrf.mxu0
        %v848 = vadd.f32 0.0, %v847
        %849 = vmatmul.f32.gmra.mxu0 %v822
        %v850 = vpop.f32.mrf.mxu0
        %v851 = vadd.f32 0.0, %v850
        %852 = vmatmul.f32.gmra.mxu0 %v825
        %v853 = vpop.f32.mrf.mxu0
        %v854 = vadd.f32 0.0, %v853
        %855 = vmatmul.f32.gmra.mxu0 %v828
        %v856 = vpop.f32.mrf.mxu0
        %v857 = vadd.f32 0.0, %v856
        %858 = vdwg.mxu0
        %859 = vmatpush.msra.mxu0 0.0
        %860 = vmatpush.msra.mxu0 0.0
        %861 = vmatpush.msra.mxu0 0.0
        %862 = vmatpush.msra.mxu0 0.0
        %863 = vmatpush.msra.mxu0 0.0
        %864 = vmatpush.msra.mxu0 0.0
        %865 = vmatpush.msra.mxu0 0.0
        %866 = vmatpush.msra.mxu0 0.0
        %867 = vmatpush.msra.mxu0 0.0
        %868 = vmatpush.msra.mxu0 0.0
        %869 = vmatpush.msra.mxu0 0.0
        %870 = vmatpush.msra.mxu0 0.0
        %871 = vmatpush.msra.mxu0 0.0
        %872 = vmatpush.msra.mxu0 0.0
        %873 = vmatpush.msra.mxu0 0.0
        %874 = vmatpush.msra.mxu0 %v813
        %875 = vmatmul.f32.gmra.mxu0 %v819
        %v876 = vpop.f32.mrf.mxu0
        %v877 = vadd.f32 0.0, %v876
        %878 = vmatmul.f32.gmra.mxu0 %v822
        %v879 = vpop.f32.mrf.mxu0
        %v880 = vadd.f32 0.0, %v879
        %881 = vmatmul.f32.gmra.mxu0 %v825
        %v882 = vpop.f32.mrf.mxu0
        %v883 = vadd.f32 0.0, %v882
        %884 = vmatmul.f32.gmra.mxu0 %v828
        %v885 = vpop.f32.mrf.mxu0
        %v886 = vadd.f32 0.0, %v885
        %887 = vdwg.mxu0
        %v888 = vadd.f32 %v332, %v848
        %v889 = vadd.f32 %v333, %v877
        %v890 = vadd.f32 %v334, %v851
        %v891 = vadd.f32 %v335, %v880
        %v892 = vadd.f32 %v336, %v854
        %v893 = vadd.f32 %v337, %v883
        %v894 = vadd.f32 %v338, %v857
        %v895 = vadd.f32 %v339, %v886
        %896 = vset.pattern.permute.xlu0 4
        %897 = vperm.xlu0 %896, %v308
        %v898 = vpop.permute.xlu0 %897
        %900 = vset.pattern.permute.xlu0 4
        %901 = vperm.xlu0 %900, %v309
        %v902 = vpop.permute.xlu0 %901
        %904 = vset.pattern.permute.xlu0 4
        %905 = vperm.xlu0 %904, %v310
        %v906 = vpop.permute.xlu0 %905
        %908 = vset.pattern.permute.xlu0 4
        %909 = vperm.xlu0 %908, %v311
        %v910 = vpop.permute.xlu0 %909
        %v912 = vadd.f32 %v888, %v898
        %v913 = vadd.f32 %v889, %v898
        %v914 = vadd.f32 %v890, %v902
        %v915 = vadd.f32 %v891, %v902
        %v916 = vadd.f32 %v892, %v906
        %v917 = vadd.f32 %v893, %v906
        %v918 = vadd.f32 %v894, %v910
        %v919 = vadd.f32 %v895, %v910
        %v920 = vadd.f32 %v912, %v914
        %v921 = vadd.f32 %v920, %v916
        %v922 = vadd.f32 %v921, %v918
        %v923 = vrot.slane %v922, 4
        %v924 = vadd.f32 %v922, %v923
        %v925 = vrot.slane %v924, 2
        %v926 = vadd.f32 %v924, %v925
        %v927 = vrot.slane %v926, 1
        %v928 = vadd.f32 %v926, %v927
        %v929 = vadd.f32 %v913, %v915
        %v930 = vadd.f32 %v929, %v917
        %v931 = vadd.f32 %v930, %v919
        %v932 = vrot.slane %v931, 4
        %v933 = vadd.f32 %v931, %v932
        %v934 = vrot.slane %v933, 2
        %v935 = vadd.f32 %v933, %v934
        %v936 = vrot.slane %v935, 1
        %v937 = vadd.f32 %v935, %v936
        %v938 = vmul.f32 %v928, %v368
        %v939 = vmul.f32 %v937, %v368
        %v940 = vsub.f32 %v912, %v938
        %v941 = vsub.f32 %v913, %v939
        %v942 = vsub.f32 %v914, %v938
        %v943 = vsub.f32 %v915, %v939
        %v944 = vsub.f32 %v916, %v938
        %v945 = vsub.f32 %v917, %v939
        %v946 = vsub.f32 %v918, %v938
        %v947 = vsub.f32 %v919, %v939
        %v948 = vmul.f32 %v940, %v940
        %v949 = vmul.f32 %v941, %v941
        %v950 = vmul.f32 %v942, %v942
        %v951 = vmul.f32 %v943, %v943
        %v952 = vmul.f32 %v944, %v944
        %v953 = vmul.f32 %v945, %v945
        %v954 = vmul.f32 %v946, %v946
        %v955 = vmul.f32 %v947, %v947
        %v956 = vadd.f32 %v948, %v950
        %v957 = vadd.f32 %v956, %v952
        %v958 = vadd.f32 %v957, %v954
        %v959 = vrot.slane %v958, 4
        %v960 = vadd.f32 %v958, %v959
        %v961 = vrot.slane %v960, 2
        %v962 = vadd.f32 %v960, %v961
        %v963 = vrot.slane %v962, 1
        %v964 = vadd.f32 %v962, %v963
        %v965 = vadd.f32 %v949, %v951
        %v966 = vadd.f32 %v965, %v953
        %v967 = vadd.f32 %v966, %v955
        %v968 = vrot.slane %v967, 4
        %v969 = vadd.f32 %v967, %v968
        %v970 = vrot.slane %v969, 2
        %v971 = vadd.f32 %v969, %v970
        %v972 = vrot.slane %v971, 1
        %v973 = vadd.f32 %v971, %v972
        %v974 = vmul.f32 %v964, %v368
        %v975 = vmul.f32 %v973, %v368
        %v976 = vadd.f32 %v974, 1e-05
        %v977 = vadd.f32 %v975, 1e-05
        %v978 = vrsqrt.pop %v976
        %v979 = vmul.f32 %v978, %v976
        %v980 = vmul.f32 %v979, %v978
        %v981 = vmul.f32 0.5, %v980
        %v982 = vsub.f32 1.5, %v981
        %v983 = vmul.f32 %v978, %v982
        %vm984 = vweird.f32 %v976
        %vm985 = vweird.f32 %v978
        %vm986 = vmor %vm984, %vm985
        %v987 = vsel %vm986, %v978, %v983
        %v988 = vrsqrt.pop %v977
        %v989 = vmul.f32 %v988, %v977
        %v990 = vmul.f32 %v989, %v988
        %v991 = vmul.f32 0.5, %v990
        %v992 = vsub.f32 1.5, %v991
        %v993 = vmul.f32 %v988, %v992
        %vm994 = vweird.f32 %v977
        %vm995 = vweird.f32 %v988
        %vm996 = vmor %vm994, %vm995
        %v997 = vsel %vm996, %v988, %v993
        %v998 = vmul.f32 %v940, %v987
        %v999 = vmul.f32 %v941, %v997
        %v1000 = vmul.f32 %v942, %v987
        %v1001 = vmul.f32 %v943, %v997
        %v1002 = vmul.f32 %v944, %v987
        %v1003 = vmul.f32 %v945, %v997
        %v1004 = vmul.f32 %v946, %v987
        %v1005 = vmul.f32 %v947, %v997
        %1006 = vset.pattern.permute.xlu0 2
        %1007 = vperm.xlu0 %1006, %v308
        %v1008 = vpop.permute.xlu0 %1007
        %1010 = vset.pattern.permute.xlu0 2
        %1011 = vperm.xlu0 %1010, %v309
        %v1012 = vpop.permute.xlu0 %1011
        %1014 = vset.pattern.permute.xlu0 2
        %1015 = vperm.xlu0 %1014, %v310
        %v1016 = vpop.permute.xlu0 %1015
        %1018 = vset.pattern.permute.xlu0 2
        %1019 = vperm.xlu0 %1018, %v311
        %v1020 = vpop.permute.xlu0 %1019
        %v1022 = vmul.f32 %v998, %v1008
        %v1023 = vmul.f32 %v999, %v1008
        %v1024 = vmul.f32 %v1000, %v1012
        %v1025 = vmul.f32 %v1001, %v1012
        %v1026 = vmul.f32 %v1002, %v1016
        %v1027 = vmul.f32 %v1003, %v1016
        %v1028 = vmul.f32 %v1004, %v1020
        %v1029 = vmul.f32 %v1005, %v1020
        %1030 = vset.pattern.permute.xlu0 3
        %1031 = vperm.xlu0 %1030, %v308
        %v1032 = vpop.permute.xlu0 %1031
        %1034 = vset.pattern.permute.xlu0 3
        %1035 = vperm.xlu0 %1034, %v309
        %v1036 = vpop.permute.xlu0 %1035
        %1038 = vset.pattern.permute.xlu0 3
        %1039 = vperm.xlu0 %1038, %v310
        %v1040 = vpop.permute.xlu0 %1039
        %1042 = vset.pattern.permute.xlu0 3
        %1043 = vperm.xlu0 %1042, %v311
        %v1044 = vpop.permute.xlu0 %1043
        %v1046 = vadd.f32 %v1022, %v1032
        %v1047 = vadd.f32 %v1023, %v1032
        %v1048 = vadd.f32 %v1024, %v1036
        %v1049 = vadd.f32 %v1025, %v1036
        %v1050 = vadd.f32 %v1026, %v1040
        %v1051 = vadd.f32 %v1027, %v1040
        %v1052 = vadd.f32 %v1028, %v1044
        %v1053 = vadd.f32 %v1029, %v1044
        %1054 = vset.pattern.permute.xlu0 6
        %1055 = vperm.xlu0 %1054, %v308
        %v1056 = vpop.permute.xlu0 %1055
        %1058 = vset.pattern.permute.xlu0 6
        %1059 = vperm.xlu0 %1058, %v309
        %v1060 = vpop.permute.xlu0 %1059
        %1062 = vset.pattern.permute.xlu0 6
        %1063 = vperm.xlu0 %1062, %v310
        %v1064 = vpop.permute.xlu0 %1063
        %1066 = vset.pattern.permute.xlu0 6
        %1067 = vperm.xlu0 %1066, %v311
        %v1068 = vpop.permute.xlu0 %1067
        %1071 = vset.pattern.permute.xlu0 6
        %1072 = vperm.xlu0 %1071, %v312
        %v1073 = vpop.permute.xlu0 %1072
        %1076 = vset.pattern.permute.xlu0 6
        %1077 = vperm.xlu0 %1076, %v313
        %v1078 = vpop.permute.xlu0 %1077
        %1081 = vset.pattern.permute.xlu0 6
        %1082 = vperm.xlu0 %1081, %v314
        %v1083 = vpop.permute.xlu0 %1082
        %1086 = vset.pattern.permute.xlu0 6
        %1087 = vperm.xlu0 %1086, %v315
        %v1088 = vpop.permute.xlu0 %1087
        %v1091 = vsel %vm549, %v300, 0
        %v1094 = vsel %vm549, %v301, 0
        %v1097 = vsel %vm549, %v302, 0
        %v1100 = vsel %vm549, %v303, 0
        %v1103 = vsel %vm549, %v304, 0
        %v1106 = vsel %vm549, %v305, 0
        %v1109 = vsel %vm549, %v306, 0
        %v1112 = vsel %vm549, %v307, 0
        %1114 = vmatpush.msra.mxu0 0.0
        %1115 = vmatpush.msra.mxu0 0.0
        %1116 = vmatpush.msra.mxu0 0.0
        %1117 = vmatpush.msra.mxu0 0.0
        %1118 = vmatpush.msra.mxu0 0.0
        %1119 = vmatpush.msra.mxu0 0.0
        %1120 = vmatpush.msra.mxu0 0.0
        %1121 = vmatpush.msra.mxu0 0.0
        %1122 = vmatpush.msra.mxu0 0.0
        %1123 = vmatpush.msra.mxu0 0.0
        %1124 = vmatpush.msra.mxu0 0.0
        %1125 = vmatpush.msra.mxu0 0.0
        %1126 = vmatpush.msra.mxu0 %v1052
        %1127 = vmatpush.msra.mxu0 %v1050
        %1128 = vmatpush.msra.mxu0 %v1048
        %1129 = vmatpush.msra.mxu0 %v1046
        %1130 = vmatmul.f32.gmra.mxu0 %v1091
        %v1131 = vpop.f32.mrf.mxu0
        %v1132 = vadd.f32 %v1056, %v1131
        %1133 = vmatmul.f32.gmra.mxu0 %v1094
        %v1134 = vpop.f32.mrf.mxu0
        %v1135 = vadd.f32 %v1060, %v1134
        %1136 = vmatmul.f32.gmra.mxu0 %v1097
        %v1137 = vpop.f32.mrf.mxu0
        %v1138 = vadd.f32 %v1064, %v1137
        %1139 = vmatmul.f32.gmra.mxu0 %v1100
        %v1140 = vpop.f32.mrf.mxu0
        %v1141 = vadd.f32 %v1068, %v1140
        %1142 = vmatmul.f32.gmra.mxu0 %v1103
        %v1143 = vpop.f32.mrf.mxu0
        %v1144 = vadd.f32 %v1073, %v1143
        %1145 = vmatmul.f32.gmra.mxu0 %v1106
        %v1146 = vpop.f32.mrf.mxu0
        %v1147 = vadd.f32 %v1078, %v1146
        %1148 = vmatmul.f32.gmra.mxu0 %v1109
        %v1149 = vpop.f32.mrf.mxu0
        %v1150 = vadd.f32 %v1083, %v1149
        %1151 = vmatmul.f32.gmra.mxu0 %v1112
        %v1152 = vpop.f32.mrf.mxu0
        %v1153 = vadd.f32 %v1088, %v1152
        %1154 = vdwg.mxu0
        %1155 = vmatpush.msra.mxu0 0.0
        %1156 = vmatpush.msra.mxu0 0.0
        %1157 = vmatpush.msra.mxu0 0.0
        %1158 = vmatpush.msra.mxu0 0.0
        %1159 = vmatpush.msra.mxu0 0.0
        %1160 = vmatpush.msra.mxu0 0.0
        %1161 = vmatpush.msra.mxu0 0.0
        %1162 = vmatpush.msra.mxu0 0.0
        %1163 = vmatpush.msra.mxu0 0.0
        %1164 = vmatpush.msra.mxu0 0.0
        %1165 = vmatpush.msra.mxu0 0.0
        %1166 = vmatpush.msra.mxu0 0.0
        %1167 = vmatpush.msra.mxu0 %v1053
        %1168 = vmatpush.msra.mxu0 %v1051
        %1169 = vmatpush.msra.mxu0 %v1049
        %1170 = vmatpush.msra.mxu0 %v1047
        %1171 = vmatmul.f32.gmra.mxu0 %v1091
        %v1172 = vpop.f32.mrf.mxu0
        %v1173 = vadd.f32 %v1056, %v1172
        %1174 = vmatmul.f32.gmra.mxu0 %v1094
        %v1175 = vpop.f32.mrf.mxu0
        %v1176 = vadd.f32 %v1060, %v1175
        %1177 = vmatmul.f32.gmra.mxu0 %v1097
        %v1178 = vpop.f32.mrf.mxu0
        %v1179 = vadd.f32 %v1064, %v1178
        %1180 = vmatmul.f32.gmra.mxu0 %v1100
        %v1181 = vpop.f32.mrf.mxu0
        %v1182 = vadd.f32 %v1068, %v1181
        %1183 = vmatmul.f32.gmra.mxu0 %v1103
        %v1184 = vpop.f32.mrf.mxu0
        %v1185 = vadd.f32 %v1073, %v1184
        %1186 = vmatmul.f32.gmra.mxu0 %v1106
        %v1187 = vpop.f32.mrf.mxu0
        %v1188 = vadd.f32 %v1078, %v1187
        %1189 = vmatmul.f32.gmra.mxu0 %v1109
        %v1190 = vpop.f32.mrf.mxu0
        %v1191 = vadd.f32 %v1083, %v1190
        %1192 = vmatmul.f32.gmra.mxu0 %v1112
        %v1193 = vpop.f32.mrf.mxu0
        %v1194 = vadd.f32 %v1088, %v1193
        %1195 = vdwg.mxu0
        %v1196 = vmul.f32 %v1132, 0.5
        %v1197 = vmul.f32 %v1173, 0.5
        %v1198 = vmul.f32 %v1135, 0.5
        %v1199 = vmul.f32 %v1176, 0.5
        %v1200 = vmul.f32 %v1138, 0.5
        %v1201 = vmul.f32 %v1179, 0.5
        %v1202 = vmul.f32 %v1141, 0.5
        %v1203 = vmul.f32 %v1182, 0.5
        %v1204 = vmul.f32 %v1144, 0.5
        %v1205 = vmul.f32 %v1185, 0.5
        %v1206 = vmul.f32 %v1147, 0.5
        %v1207 = vmul.f32 %v1188, 0.5
        %v1208 = vmul.f32 %v1150, 0.5
        %v1209 = vmul.f32 %v1191, 0.5
        %v1210 = vmul.f32 %v1153, 0.5
        %v1211 = vmul.f32 %v1194, 0.5
        %v1212 = vmul.f32 %v1132, 0.70710677
        %v1213 = vmul.f32 %v1173, 0.70710677
        %v1214 = vmul.f32 %v1135, 0.70710677
        %v1215 = vmul.f32 %v1176, 0.70710677
        %v1216 = vmul.f32 %v1138, 0.70710677
        %v1217 = vmul.f32 %v1179, 0.70710677
        %v1218 = vmul.f32 %v1141, 0.70710677
        %v1219 = vmul.f32 %v1182, 0.70710677
        %v1220 = vmul.f32 %v1144, 0.70710677
        %v1221 = vmul.f32 %v1185, 0.70710677
        %v1222 = vmul.f32 %v1147, 0.70710677
        %v1223 = vmul.f32 %v1188, 0.70710677
        %v1224 = vmul.f32 %v1150, 0.70710677
        %v1225 = vmul.f32 %v1191, 0.70710677
        %v1226 = vmul.f32 %v1153, 0.70710677
        %v1227 = vmul.f32 %v1194, 0.70710677
        %v1228 = vand.u32 2147483647, %v1212
        %v1229 = vand.u32 2147483647, %v1213
        %v1230 = vand.u32 2147483647, %v1214
        %v1231 = vand.u32 2147483647, %v1215
        %v1232 = vand.u32 2147483647, %v1216
        %v1233 = vand.u32 2147483647, %v1217
        %v1234 = vand.u32 2147483647, %v1218
        %v1235 = vand.u32 2147483647, %v1219
        %v1236 = vand.u32 2147483647, %v1220
        %v1237 = vand.u32 2147483647, %v1221
        %v1238 = vand.u32 2147483647, %v1222
        %v1239 = vand.u32 2147483647, %v1223
        %v1240 = vand.u32 2147483647, %v1224
        %v1241 = vand.u32 2147483647, %v1225
        %v1242 = vand.u32 2147483647, %v1226
        %v1243 = vand.u32 2147483647, %v1227
        %v1244 = vmul.f32 %v1228, 0.3275911
        %v1245 = vmul.f32 %v1229, 0.3275911
        %v1246 = vmul.f32 %v1230, 0.3275911
        %v1247 = vmul.f32 %v1231, 0.3275911
        %v1248 = vmul.f32 %v1232, 0.3275911
        %v1249 = vmul.f32 %v1233, 0.3275911
        %v1250 = vmul.f32 %v1234, 0.3275911
        %v1251 = vmul.f32 %v1235, 0.3275911
        %v1252 = vmul.f32 %v1236, 0.3275911
        %v1253 = vmul.f32 %v1237, 0.3275911
        %v1254 = vmul.f32 %v1238, 0.3275911
        %v1255 = vmul.f32 %v1239, 0.3275911
        %v1256 = vmul.f32 %v1240, 0.3275911
        %v1257 = vmul.f32 %v1241, 0.3275911
        %v1258 = vmul.f32 %v1242, 0.3275911
        %v1259 = vmul.f32 %v1243, 0.3275911
        %v1260 = vadd.f32 %v1244, 1.0
        %v1261 = vadd.f32 %v1245, 1.0
        %v1262 = vadd.f32 %v1246, 1.0
        %v1263 = vadd.f32 %v1247, 1.0
        %v1264 = vadd.f32 %v1248, 1.0
        %v1265 = vadd.f32 %v1249, 1.0
        %v1266 = vadd.f32 %v1250, 1.0
        %v1267 = vadd.f32 %v1251, 1.0
        %v1268 = vadd.f32 %v1252, 1.0
        %v1269 = vadd.f32 %v1253, 1.0
        %v1270 = vadd.f32 %v1254, 1.0
        %v1271 = vadd.f32 %v1255, 1.0
        %v1272 = vadd.f32 %v1256, 1.0
        %v1273 = vadd.f32 %v1257, 1.0
        %v1274 = vadd.f32 %v1258, 1.0
        %v1275 = vadd.f32 %v1259, 1.0
        %v1276 = vrcp.pop %v1260
        %v1277 = vrcp.pop %v1261
        %v1278 = vrcp.pop %v1262
        %v1279 = vrcp.pop %v1263
        %v1280 = vrcp.pop %v1264
        %v1281 = vrcp.pop %v1265
        %v1282 = vrcp.pop %v1266
        %v1283 = vrcp.pop %v1267
        %v1284 = vrcp.pop %v1268
        %v1285 = vrcp.pop %v1269
        %v1286 = vrcp.pop %v1270
        %v1287 = vrcp.pop %v1271
        %v1288 = vrcp.pop %v1272
        %v1289 = vrcp.pop %v1273
        %v1290 = vrcp.pop %v1274
        %v1291 = vrcp.pop %v1275
        %v1292 = vmul.f32 %v1276, 1.0614054
        %v1293 = vmul.f32 %v1277, 1.0614054
        %v1294 = vmul.f32 %v1278, 1.0614054
        %v1295 = vmul.f32 %v1279, 1.0614054
        %v1296 = vmul.f32 %v1280, 1.0614054
        %v1297 = vmul.f32 %v1281, 1.0614054
        %v1298 = vmul.f32 %v1282, 1.0614054
        %v1299 = vmul.f32 %v1283, 1.0614054
        %v1300 = vmul.f32 %v1284, 1.0614054
        %v1301 = vmul.f32 %v1285, 1.0614054
        %v1302 = vmul.f32 %v1286, 1.0614054
        %v1303 = vmul.f32 %v1287, 1.0614054
        %v1304 = vmul.f32 %v1288, 1.0614054
        %v1305 = vmul.f32 %v1289, 1.0614054
        %v1306 = vmul.f32 %v1290, 1.0614054
        %v1307 = vmul.f32 %v1291, 1.0614054
        %v1308 = vadd.f32 %v1292, -1.4531521
        %v1309 = vadd.f32 %v1293, -1.4531521
        %v1310 = vadd.f32 %v1294, -1.4531521
        %v1311 = vadd.f32 %v1295, -1.4531521
        %v1312 = vadd.f32 %v1296, -1.4531521
        %v1313 = vadd.f32 %v1297, -1.4531521
        %v1314 = vadd.f32 %v1298, -1.4531521
        %v1315 = vadd.f32 %v1299, -1.4531521
        %v1316 = vadd.f32 %v1300, -1.4531521
        %v1317 = vadd.f32 %v1301, -1.4531521
        %v1318 = vadd.f32 %v1302, -1.4531521
        %v1319 = vadd.f32 %v1303, -1.4531521
        %v1320 = vadd.f32 %v1304, -1.4531521
        %v1321 = vadd.f32 %v1305, -1.4531521
        %v1322 = vadd.f32 %v1306, -1.4531521
        %v1323 = vadd.f32 %v1307, -1.4531521
        %v1324 = vmul.f32 %v1308, %v1276
        %v1325 = vmul.f32 %v1309, %v1277
        %v1326 = vmul.f32 %v1310, %v1278
        %v1327 = vmul.f32 %v1311, %v1279
        %v1328 = vmul.f32 %v1312, %v1280
        %v1329 = vmul.f32 %v1313, %v1281
        %v1330 = vmul.f32 %v1314, %v1282
        %v1331 = vmul.f32 %v1315, %v1283
        %v1332 = vmul.f32 %v1316, %v1284
        %v1333 = vmul.f32 %v1317, %v1285
        %v1334 = vmul.f32 %v1318, %v1286
        %v1335 = vmul.f32 %v1319, %v1287
        %v1336 = vmul.f32 %v1320, %v1288
        %v1337 = vmul.f32 %v1321, %v1289
        %v1338 = vmul.f32 %v1322, %v1290
        %v1339 = vmul.f32 %v1323, %v1291
        %v1340 = vadd.f32 %v1324, 1.4214138
        %v1341 = vadd.f32 %v1325, 1.4214138
        %v1342 = vadd.f32 %v1326, 1.4214138
        %v1343 = vadd.f32 %v1327, 1.4214138
        %v1344 = vadd.f32 %v1328, 1.4214138
        %v1345 = vadd.f32 %v1329, 1.4214138
        %v1346 = vadd.f32 %v1330, 1.4214138
        %v1347 = vadd.f32 %v1331, 1.4214138
        %v1348 = vadd.f32 %v1332, 1.4214138
        %v1349 = vadd.f32 %v1333, 1.4214138
        %v1350 = vadd.f32 %v1334, 1.4214138
        %v1351 = vadd.f32 %v1335, 1.4214138
        %v1352 = vadd.f32 %v1336, 1.4214138
        %v1353 = vadd.f32 %v1337, 1.4214138
        %v1354 = vadd.f32 %v1338, 1.4214138
        %v1355 = vadd.f32 %v1339, 1.4214138
        %v1356 = vmul.f32 %v1340, %v1276
        %v1357 = vmul.f32 %v1341, %v1277
        %v1358 = vmul.f32 %v1342, %v1278
        %v1359 = vmul.f32 %v1343, %v1279
        %v1360 = vmul.f32 %v1344, %v1280
        %v1361 = vmul.f32 %v1345, %v1281
        %v1362 = vmul.f32 %v1346, %v1282
        %v1363 = vmul.f32 %v1347, %v1283
        %v1364 = vmul.f32 %v1348, %v1284
        %v1365 = vmul.f32 %v1349, %v1285
        %v1366 = vmul.f32 %v1350, %v1286
        %v1367 = vmul.f32 %v1351, %v1287
        %v1368 = vmul.f32 %v1352, %v1288
        %v1369 = vmul.f32 %v1353, %v1289
        %v1370 = vmul.f32 %v1354, %v1290
        %v1371 = vmul.f32 %v1355, %v1291
        %v1372 = vadd.f32 %v1356, -0.28449672
        %v1373 = vadd.f32 %v1357, -0.28449672
        %v1374 = vadd.f32 %v1358, -0.28449672
        %v1375 = vadd.f32 %v1359, -0.28449672
        %v1376 = vadd.f32 %v1360, -0.28449672
        %v1377 = vadd.f32 %v1361, -0.28449672
        %v1378 = vadd.f32 %v1362, -0.28449672
        %v1379 = vadd.f32 %v1363, -0.28449672
        %v1380 = vadd.f32 %v1364, -0.28449672
        %v1381 = vadd.f32 %v1365, -0.28449672
        %v1382 = vadd.f32 %v1366, -0.28449672
        %v1383 = vadd.f32 %v1367, -0.28449672
        %v1384 = vadd.f32 %v1368, -0.28449672
        %v1385 = vadd.f32 %v1369, -0.28449672
        %v1386 = vadd.f32 %v1370, -0.28449672
        %v1387 = vadd.f32 %v1371, -0.28449672
        %v1388 = vmul.f32 %v1372, %v1276
        %v1389 = vmul.f32 %v1373, %v1277
        %v1390 = vmul.f32 %v1374, %v1278
        %v1391 = vmul.f32 %v1375, %v1279
        %v1392 = vmul.f32 %v1376, %v1280
        %v1393 = vmul.f32 %v1377, %v1281
        %v1394 = vmul.f32 %v1378, %v1282
        %v1395 = vmul.f32 %v1379, %v1283
        %v1396 = vmul.f32 %v1380, %v1284
        %v1397 = vmul.f32 %v1381, %v1285
        %v1398 = vmul.f32 %v1382, %v1286
        %v1399 = vmul.f32 %v1383, %v1287
        %v1400 = vmul.f32 %v1384, %v1288
        %v1401 = vmul.f32 %v1385, %v1289
        %v1402 = vmul.f32 %v1386, %v1290
        %v1403 = vmul.f32 %v1387, %v1291
        %v1404 = vadd.f32 %v1388, 0.2548296
        %v1405 = vadd.f32 %v1389, 0.2548296
        %v1406 = vadd.f32 %v1390, 0.2548296
        %v1407 = vadd.f32 %v1391, 0.2548296
        %v1408 = vadd.f32 %v1392, 0.2548296
        %v1409 = vadd.f32 %v1393, 0.2548296
        %v1410 = vadd.f32 %v1394, 0.2548296
        %v1411 = vadd.f32 %v1395, 0.2548296
        %v1412 = vadd.f32 %v1396, 0.2548296
        %v1413 = vadd.f32 %v1397, 0.2548296
        %v1414 = vadd.f32 %v1398, 0.2548296
        %v1415 = vadd.f32 %v1399, 0.2548296
        %v1416 = vadd.f32 %v1400, 0.2548296
        %v1417 = vadd.f32 %v1401, 0.2548296
        %v1418 = vadd.f32 %v1402, 0.2548296
        %v1419 = vadd.f32 %v1403, 0.2548296
        %v1420 = vmul.f32 %v1404, %v1276
        %v1421 = vmul.f32 %v1405, %v1277
        %v1422 = vmul.f32 %v1406, %v1278
        %v1423 = vmul.f32 %v1407, %v1279
        %v1424 = vmul.f32 %v1408, %v1280
        %v1425 = vmul.f32 %v1409, %v1281
        %v1426 = vmul.f32 %v1410, %v1282
        %v1427 = vmul.f32 %v1411, %v1283
        %v1428 = vmul.f32 %v1412, %v1284
        %v1429 = vmul.f32 %v1413, %v1285
        %v1430 = vmul.f32 %v1414, %v1286
        %v1431 = vmul.f32 %v1415, %v1287
        %v1432 = vmul.f32 %v1416, %v1288
        %v1433 = vmul.f32 %v1417, %v1289
        %v1434 = vmul.f32 %v1418, %v1290
        %v1435 = vmul.f32 %v1419, %v1291
        %v1436 = vsub.f32 0.0, %v1228
        %v1437 = vsub.f32 0.0, %v1229
        %v1438 = vsub.f32 0.0, %v1230
        %v1439 = vsub.f32 0.0, %v1231
        %v1440 = vsub.f32 0.0, %v1232
        %v1441 = vsub.f32 0.0, %v1233
        %v1442 = vsub.f32 0.0, %v1234
        %v1443 = vsub.f32 0.0, %v1235
        %v1444 = vsub.f32 0.0, %v1236
        %v1445 = vsub.f32 0.0, %v1237
        %v1446 = vsub.f32 0.0, %v1238
        %v1447 = vsub.f32 0.0, %v1239
        %v1448 = vsub.f32 0.0, %v1240
        %v1449 = vsub.f32 0.0, %v1241
        %v1450 = vsub.f32 0.0, %v1242
        %v1451 = vsub.f32 0.0, %v1243
        %v1452 = vmul.f32 %v1436, %v1228
        %v1453 = vmul.f32 %v1437, %v1229
        %v1454 = vmul.f32 %v1438, %v1230
        %v1455 = vmul.f32 %v1439, %v1231
        %v1456 = vmul.f32 %v1440, %v1232
        %v1457 = vmul.f32 %v1441, %v1233
        %v1458 = vmul.f32 %v1442, %v1234
        %v1459 = vmul.f32 %v1443, %v1235
        %v1460 = vmul.f32 %v1444, %v1236
        %v1461 = vmul.f32 %v1445, %v1237
        %v1462 = vmul.f32 %v1446, %v1238
        %v1463 = vmul.f32 %v1447, %v1239
        %v1464 = vmul.f32 %v1448, %v1240
        %v1465 = vmul.f32 %v1449, %v1241
        %v1466 = vmul.f32 %v1450, %v1242
        %v1467 = vmul.f32 %v1451, %v1243
        %v1468 = vmul.f32 %v1452, 1.442695
        %v1469 = vpow.pop %v1468
        %v1470 = vmul.f32 %v1453, 1.442695
        %v1471 = vpow.pop %v1470
        %v1472 = vmul.f32 %v1454, 1.442695
        %v1473 = vpow.pop %v1472
        %v1474 = vmul.f32 %v1455, 1.442695
        %v1475 = vpow.pop %v1474
        %v1476 = vmul.f32 %v1456, 1.442695
        %v1477 = vpow.pop %v1476
        %v1478 = vmul.f32 %v1457, 1.442695
        %v1479 = vpow.pop %v1478
        %v1480 = vmul.f32 %v1458, 1.442695
        %v1481 = vpow.pop %v1480
        %v1482 = vmul.f32 %v1459, 1.442695
        %v1483 = vpow.pop %v1482
        %v1484 = vmul.f32 %v1460, 1.442695
        %v1485 = vpow.pop %v1484
        %v1486 = vmul.f32 %v1461, 1.442695
        %v1487 = vpow.pop %v1486
        %v1488 = vmul.f32 %v1462, 1.442695
        %v1489 = vpow.pop %v1488
        %v1490 = vmul.f32 %v1463, 1.442695
        %v1491 = vpow.pop %v1490
        %v1492 = vmul.f32 %v1464, 1.442695
        %v1493 = vpow.pop %v1492
        %v1494 = vmul.f32 %v1465, 1.442695
        %v1495 = vpow.pop %v1494
        %v1496 = vmul.f32 %v1466, 1.442695
        %v1497 = vpow.pop %v1496
        %v1498 = vmul.f32 %v1467, 1.442695
        %v1499 = vpow.pop %v1498
        %v1500 = vmul.f32 %v1420, %v1469
        %v1501 = vmul.f32 %v1421, %v1471
        %v1502 = vmul.f32 %v1422, %v1473
        %v1503 = vmul.f32 %v1423, %v1475
        %v1504 = vmul.f32 %v1424, %v1477
        %v1505 = vmul.f32 %v1425, %v1479
        %v1506 = vmul.f32 %v1426, %v1481
        %v1507 = vmul.f32 %v1427, %v1483
        %v1508 = vmul.f32 %v1428, %v1485
        %v1509 = vmul.f32 %v1429, %v1487
        %v1510 = vmul.f32 %v1430, %v1489
        %v1511 = vmul.f32 %v1431, %v1491
        %v1512 = vmul.f32 %v1432, %v1493
        %v1513 = vmul.f32 %v1433, %v1495
        %v1514 = vmul.f32 %v1434, %v1497
        %v1515 = vmul.f32 %v1435, %v1499
        %v1516 = vsub.f32 1.0, %v1500
        %v1517 = vsub.f32 1.0, %v1501
        %v1518 = vsub.f32 1.0, %v1502
        %v1519 = vsub.f32 1.0, %v1503
        %v1520 = vsub.f32 1.0, %v1504
        %v1521 = vsub.f32 1.0, %v1505
        %v1522 = vsub.f32 1.0, %v1506
        %v1523 = vsub.f32 1.0, %v1507
        %v1524 = vsub.f32 1.0, %v1508
        %v1525 = vsub.f32 1.0, %v1509
        %v1526 = vsub.f32 1.0, %v1510
        %v1527 = vsub.f32 1.0, %v1511
        %v1528 = vsub.f32 1.0, %v1512
        %v1529 = vsub.f32 1.0, %v1513
        %v1530 = vsub.f32 1.0, %v1514
        %v1531 = vsub.f32 1.0, %v1515
        %vm1532 = vcmp.lt.f32.partialorder %v1212, 0.0
        %vm1533 = vcmp.lt.f32.partialorder %v1213, 0.0
        %vm1534 = vcmp.lt.f32.partialorder %v1214, 0.0
        %vm1535 = vcmp.lt.f32.partialorder %v1215, 0.0
        %vm1536 = vcmp.lt.f32.partialorder %v1216, 0.0
        %vm1537 = vcmp.lt.f32.partialorder %v1217, 0.0
        %vm1538 = vcmp.lt.f32.partialorder %v1218, 0.0
        %vm1539 = vcmp.lt.f32.partialorder %v1219, 0.0
        %vm1540 = vcmp.lt.f32.partialorder %v1220, 0.0
        %vm1541 = vcmp.lt.f32.partialorder %v1221, 0.0
        %vm1542 = vcmp.lt.f32.partialorder %v1222, 0.0
        %vm1543 = vcmp.lt.f32.partialorder %v1223, 0.0
        %vm1544 = vcmp.lt.f32.partialorder %v1224, 0.0
        %vm1545 = vcmp.lt.f32.partialorder %v1225, 0.0
        %vm1546 = vcmp.lt.f32.partialorder %v1226, 0.0
        %vm1547 = vcmp.lt.f32.partialorder %v1227, 0.0
        %v1548 = vsub.f32 0.0, %v1516
        %v1549 = vsub.f32 0.0, %v1517
        %v1550 = vsub.f32 0.0, %v1518
        %v1551 = vsub.f32 0.0, %v1519
        %v1552 = vsub.f32 0.0, %v1520
        %v1553 = vsub.f32 0.0, %v1521
        %v1554 = vsub.f32 0.0, %v1522
        %v1555 = vsub.f32 0.0, %v1523
        %v1556 = vsub.f32 0.0, %v1524
        %v1557 = vsub.f32 0.0, %v1525
        %v1558 = vsub.f32 0.0, %v1526
        %v1559 = vsub.f32 0.0, %v1527
        %v1560 = vsub.f32 0.0, %v1528
        %v1561 = vsub.f32 0.0, %v1529
        %v1562 = vsub.f32 0.0, %v1530
        %v1563 = vsub.f32 0.0, %v1531
        %v1564 = vsel %vm1532, %v1548, %v1516
        %v1565 = vsel %vm1533, %v1549, %v1517
        %v1566 = vsel %vm1534, %v1550, %v1518
        %v1567 = vsel %vm1535, %v1551, %v1519
        %v1568 = vsel %vm1536, %v1552, %v1520
        %v1569 = vsel %vm1537, %v1553, %v1521
        %v1570 = vsel %vm1538, %v1554, %v1522
        %v1571 = vsel %vm1539, %v1555, %v1523
        %v1572 = vsel %vm1540, %v1556, %v1524
        %v1573 = vsel %vm1541, %v1557, %v1525
        %v1574 = vsel %vm1542, %v1558, %v1526
        %v1575 = vsel %vm1543, %v1559, %v1527
        %v1576 = vsel %vm1544, %v1560, %v1528
        %v1577 = vsel %vm1545, %v1561, %v1529
        %v1578 = vsel %vm1546, %v1562, %v1530
        %v1579 = vsel %vm1547, %v1563, %v1531
        %v1580 = vadd.f32 %v1564, 1.0
        %v1581 = vadd.f32 %v1565, 1.0
        %v1582 = vadd.f32 %v1566, 1.0
        %v1583 = vadd.f32 %v1567, 1.0
        %v1584 = vadd.f32 %v1568, 1.0
        %v1585 = vadd.f32 %v1569, 1.0
        %v1586 = vadd.f32 %v1570, 1.0
        %v1587 = vadd.f32 %v1571, 1.0
        %v1588 = vadd.f32 %v1572, 1.0
        %v1589 = vadd.f32 %v1573, 1.0
        %v1590 = vadd.f32 %v1574, 1.0
        %v1591 = vadd.f32 %v1575, 1.0
        %v1592 = vadd.f32 %v1576, 1.0
        %v1593 = vadd.f32 %v1577, 1.0
        %v1594 = vadd.f32 %v1578, 1.0
        %v1595 = vadd.f32 %v1579, 1.0
        %v1596 = vmul.f32 %v1196, %v1580
        %v1597 = vmul.f32 %v1197, %v1581
        %v1598 = vmul.f32 %v1198, %v1582
        %v1599 = vmul.f32 %v1199, %v1583
        %v1600 = vmul.f32 %v1200, %v1584
        %v1601 = vmul.f32 %v1201, %v1585
        %v1602 = vmul.f32 %v1202, %v1586
        %v1603 = vmul.f32 %v1203, %v1587
        %v1604 = vmul.f32 %v1204, %v1588
        %v1605 = vmul.f32 %v1205, %v1589
        %v1606 = vmul.f32 %v1206, %v1590
        %v1607 = vmul.f32 %v1207, %v1591
        %v1608 = vmul.f32 %v1208, %v1592
        %v1609 = vmul.f32 %v1209, %v1593
        %v1610 = vmul.f32 %v1210, %v1594
        %v1611 = vmul.f32 %v1211, %v1595
        %v1612 = vld [vmem:[%s5] sm:$0xff]
        %v1613 = vld [vmem:[%s5 + $0x8] sm:$0xff]
        %v1614 = vld [vmem:[%s5 + $0x10] sm:$0xff]
        %v1615 = vld [vmem:[%s5 + $0x18] sm:$0xff]
        %vm1616 = vcmask 523264
        %v1618 = vsel %vm1616, %v1612, 0
        %v1621 = vsel %vm1616, %v1613, 0
        %v1624 = vsel %vm1616, %v1614, 0
        %v1627 = vsel %vm1616, %v1615, 0
        %1629 = vmatpush.msra.mxu0 0.0
        %1630 = vmatpush.msra.mxu0 0.0
        %1631 = vmatpush.msra.mxu0 0.0
        %1632 = vmatpush.msra.mxu0 0.0
        %1633 = vmatpush.msra.mxu0 0.0
        %1634 = vmatpush.msra.mxu0 0.0
        %1635 = vmatpush.msra.mxu0 0.0
        %1636 = vmatpush.msra.mxu0 0.0
        %1637 = vmatpush.msra.mxu0 %v1610
        %1638 = vmatpush.msra.mxu0 %v1608
        %1639 = vmatpush.msra.mxu0 %v1606
        %1640 = vmatpush.msra.mxu0 %v1604
        %1641 = vmatpush.msra.mxu0 %v1602
        %1642 = vmatpush.msra.mxu0 %v1600
        %1643 = vmatpush.msra.mxu0 %v1598
        %1644 = vmatpush.msra.mxu0 %v1596
        %1645 = vmatmul.f32.gmra.mxu0 %v1618
        %v1646 = vpop.f32.mrf.mxu0
        %v1647 = vadd.f32 0.0, %v1646
        %1648 = vmatmul.f32.gmra.mxu0 %v1621
        %v1649 = vpop.f32.mrf.mxu0
        %v1650 = vadd.f32 0.0, %v1649
        %1651 = vmatmul.f32.gmra.mxu0 %v1624
        %v1652 = vpop.f32.mrf.mxu0
        %v1653 = vadd.f32 0.0, %v1652
        %1654 = vmatmul.f32.gmra.mxu0 %v1627
        %v1655 = vpop.f32.mrf.mxu0
        %v1656 = vadd.f32 0.0, %v1655
        %1657 = vdwg.mxu0
        %1658 = vmatpush.msra.mxu0 0.0
        %1659 = vmatpush.msra.mxu0 0.0
        %1660 = vmatpush.msra.mxu0 0.0
        %1661 = vmatpush.msra.mxu0 0.0
        %1662 = vmatpush.msra.mxu0 0.0
        %1663 = vmatpush.msra.mxu0 0.0
        %1664 = vmatpush.msra.mxu0 0.0
        %1665 = vmatpush.msra.mxu0 0.0
        %1666 = vmatpush.msra.mxu0 %v1611
        %1667 = vmatpush.msra.mxu0 %v1609
        %1668 = vmatpush.msra.mxu0 %v1607
        %1669 = vmatpush.msra.mxu0 %v1605
        %1670 = vmatpush.msra.mxu0 %v1603
        %1671 = vmatpush.msra.mxu0 %v1601
        %1672 = vmatpush.msra.mxu0 %v1599
        %1673 = vmatpush.msra.mxu0 %v1597
        %1674 = vmatmul.f32.gmra.mxu0 %v1618
        %v1675 = vpop.f32.mrf.mxu0
        %v1676 = vadd.f32 0.0, %v1675
        %1677 = vmatmul.f32.gmra.mxu0 %v1621
        %v1678 = vpop.f32.mrf.mxu0
        %v1679 = vadd.f32 0.0, %v1678
        %1680 = vmatmul.f32.gmra.mxu0 %v1624
        %v1681 = vpop.f32.mrf.mxu0
        %v1682 = vadd.f32 0.0, %v1681
        %1683 = vmatmul.f32.gmra.mxu0 %v1627
        %v1684 = vpop.f32.mrf.mxu0
        %v1685 = vadd.f32 0.0, %v1684
        %1686 = vdwg.mxu0
        %v1687 = vadd.f32 %v912, %v1647
        %v1688 = vadd.f32 %v913, %v1676
        %v1689 = vadd.f32 %v914, %v1650
        %v1690 = vadd.f32 %v915, %v1679
        %v1691 = vadd.f32 %v916, %v1653
        %v1692 = vadd.f32 %v917, %v1682
        %v1693 = vadd.f32 %v918, %v1656
        %v1694 = vadd.f32 %v919, %v1685
        %1695 = vset.pattern.permute.xlu0 5
        %1696 = vperm.xlu0 %1695, %v308
        %v1697 = vpop.permute.xlu0 %1696
        %1699 = vset.pattern.permute.xlu0 5
        %1700 = vperm.xlu0 %1699, %v309
        %v1701 = vpop.permute.xlu0 %1700
        %1703 = vset.pattern.permute.xlu0 5
        %1704 = vperm.xlu0 %1703, %v310
        %v1705 = vpop.permute.xlu0 %1704
        %1707 = vset.pattern.permute.xlu0 5
        %1708 = vperm.xlu0 %1707, %v311
        %v1709 = vpop.permute.xlu0 %1708
        %v1711 = vadd.f32 %v1687, %v1697
        %v1712 = vadd.f32 %v1688, %v1697
        %v1713 = vadd.f32 %v1689, %v1701
        %v1714 = vadd.f32 %v1690, %v1701
        %v1715 = vadd.f32 %v1691, %v1705
        %v1716 = vadd.f32 %v1692, %v1705
        %v1717 = vadd.f32 %v1693, %v1709
        %v1718 = vadd.f32 %v1694, %v1709
        %1719 = vst [vmem:[%s286] sm:$0xff] %v1711
        %1720 = vst [vmem:[%s286 + $0x8] sm:$0xff] %v1712
        %1721 = vst [vmem:[%s286 + $0x10] sm:$0xff] %v1713
        %1722 = vst [vmem:[%s286 + $0x18] sm:$0xff] %v1714
        %1723 = vst [vmem:[%s286 + $0x20] sm:$0xff] %v1715
        %1724 = vst [vmem:[%s286 + $0x28] sm:$0xff] %v1716
        %1725 = vst [vmem:[%s286 + $0x30] sm:$0xff] %v1717
        %1726 = vst [vmem:[%s286 + $0x38] sm:$0xff] %v1718
        %s1727 = sand.u32 %s186, 1
        %s1728 = scalar_lea.sflag [#allocation3], %s1727
        %s1729 = sand.u32 %s186, 1
        %s1730 = smul.addr %s1729, 64
        %s1731 = scalar_lea.vmem [#allocation2], %s1730
        // Predicated region
        $region49: #{tpu_custom_call.1} parent=47 // pred_check
          %p1732 = pneg %p196
        $region50: #{tpu_custom_call.1} parent=47 // pred_check_branch
          %1734 = sbr.rel (%p1732) target = $region52
        $region51: #{tpu_custom_call.1} parent=47 // pred_region
          %1736 = vsyncadd %s1728, 0
          %s1737 = smul.addr %s21, 8
          %s1738 = smul.addr %s1737, 8
          %s1739 = scalar_lea.hbm %s7, %s1738
          %s1740 = sshll.u32 %s1731, 4
          %s1741 = int_to_ptr.vmem [resolvable:$true] %s1740
          %s1742 = sshll.u32 %s1739, 4
          %s1743 = int_to_ptr.hbm [resolvable:$true] %s1742
          %1748 = dma.vmem_to_hbm [thread:$0]  %s1741, 1024, %s1743, %s1728, 256, 256, 16
        $region52: #{tpu_custom_call.1} parent=47 // pred_fallthru
          _
      $region48: #{tpu_custom_call.1} parent=5 // pred_fallthru
        _
      %p1749 = scmp.le.s32.totalorder 2, %s16
      // Predicated region
      $region53: #{tpu_custom_call.1} parent=5 // pred_check
        %p1750 = pneg %p1749
      $region54: #{tpu_custom_call.1} parent=5 // pred_check_branch
        %1752 = sbr.rel (%p1750) target = $region56
      $region55: #{tpu_custom_call.1} parent=5 // pred_region
        %s1753 = ssub.s32 %s16, 2
        // Predicated region
        $region57: #{tpu_custom_call.1} parent=55 // pred_check
          %p1754 = pneg %p202
        $region58: #{tpu_custom_call.1} parent=55 // pred_check_branch
          %1756 = sbr.rel (%p1754) target = $region60
        $region59: #{tpu_custom_call.1} parent=55 // pred_region
          %s1757 = sand.u32 %s187, 1
          %s1758 = scalar_lea.sflag [#allocation3], %s1757
          %s1759 = sand.u32 %s187, 1
          %s1760 = smul.addr %s1759, 64
          %s1761 = scalar_lea.vmem [#allocation2], %s1760
          %1763 = dma.done %s1758, 1024
        $region60: #{tpu_custom_call.1} parent=55 // pred_fallthru
          _
      $region56: #{tpu_custom_call.1} parent=5 // pred_fallthru
        _
    $region6: #{tpu_custom_call.1} parent=1 // loop_footer
      %s20 = sadd.s32 1, %s16
    $region7: #{tpu_custom_call.1} parent=1 // loop_footer_branch
      %15 = sbr.rel target = $region3
    $region8: #{tpu_custom_call.1} parent=1 // loop_exit
      _
    %1764 = vsyncpa [#allocation3], 1
    %s1765 = scalar_lea.sflag [#allocation3], 1
    %1766 = vsyncpa %s1765, 1

</llo_original>
